<compile_context>
chip_gen: v5e
topology: v5e:2x2
jax: 0.10.0
libtpu: 0.0.40
codegen_flags: <defaults>
</compile_context>

<pallas_src>
import functools

import numpy as np
import jax
import jax.numpy as jnp
from jax.experimental import pallas as pl
from jax.experimental.pallas import tpu as pltpu

BN_EPS = 1e-5
BN_SCALE = float(1.0 / np.sqrt(1.0 + BN_EPS))   # eval-mode BN: y = x * BN_SCALE


def _round_up(x, m):
    return (x + m - 1) // m * m


# ----------------------------------------------------------------------------
# Pallas kernel: direct (non-im2col) conv + fused scale/shift/ReLU epilogue
# ----------------------------------------------------------------------------

def _conv_fused_kernel(x_ref, w_ref, scale_ref, shift_ref, o_ref, *,
                       kh, kw, hh, ww, relu):
    """One (batch image, out-channel tile) grid step.

    x_ref:     (1, hh+kh-1, ww+kw-1, Cin_p)  bf16  spatially padded input
    w_ref:     (kh*kw, Cin_p, TCO)           bf16  per-tap weight slabs
    scale_ref: (1, TCO)                      f32   fused per-channel scale
    shift_ref: (1, TCO)                      f32   fused per-channel shift
    o_ref:     (1, hh, ww, TCO)
    """
    x = x_ref[0]                                    # (Hp, Wp, Cin_p) in VMEM
    cout = o_ref.shape[-1]
    acc = jnp.zeros((hh * ww, cout), jnp.float32)
    for t in range(kh * kw):                        # static unroll over taps
        dh, dw = divmod(t, kw)
        win = x[dh:dh + hh, dw:dw + ww, :]          # shifted window (VMEM view/copy)
        a = win.reshape(hh * ww, win.shape[-1])
        acc = acc + jnp.dot(a, w_ref[t],            # bf16 x bf16 -> f32 on MXU
                            preferred_element_type=jnp.float32)
    y = acc * scale_ref[...] + shift_ref[...]       # single f32 FMA epilogue
    if relu:
        y = jnp.maximum(y, 0.0)
    o_ref[0] = y.reshape(hh, ww, cout).astype(o_ref.dtype)


def conv2d_fused(x, w, scale, shift, *, relu=True, cin_offset=0,
                 out_dtype=jnp.bfloat16):
    """'same' conv (odd k) with fused epilogue  relu(conv(x) * scale + shift).

    x:     (N, H, W, Cx) activation (may already be channel-padded; padded
           channels are zero).
    w:     (kh, kw, Cin, Cout); its Cin rows act on x channels
           [cin_offset, cin_offset+Cin); all other input channels get zero
           weight rows, so consuming a padded / multi-group tensor is exact.
    scale, shift: (Cout,) f32 per-output-channel epilogue (bias already folded
           into shift by the caller).
    Returns (N, H, W, Cout_p) `out_dtype`; channels >= Cout are exactly zero.
    """
    N, H, W, Cx = x.shape
    kh, kw, cin, cout = w.shape
    pad = (kh - 1) // 2
    Cx_p = _round_up(Cx, 128)
    Cout_p = _round_up(cout, 128)
    TCO = 256 if Cout_p % 256 == 0 else 128

    # bf16 operands for native MXU rate; zero channel padding keeps results exact.
    xp = jnp.pad(x.astype(jnp.bfloat16),
                 ((0, 0), (pad, pad), (pad, pad), (0, Cx_p - Cx)))
    wp = jnp.pad(w.astype(jnp.bfloat16),
                 ((0, 0), (0, 0),
                  (cin_offset, Cx_p - cin_offset - cin),
                  (0, Cout_p - cout)))
    wp = wp.reshape(kh * kw, Cx_p, Cout_p)

    scale_p = jnp.pad(scale.astype(jnp.float32), (0, Cout_p - cout)).reshape(1, Cout_p)
    shift_p = jnp.pad(shift.astype(jnp.float32), (0, Cout_p - cout)).reshape(1, Cout_p)

    Hp, Wp = H + 2 * pad, W + 2 * pad
    kernel = functools.partial(_conv_fused_kernel,
                               kh=kh, kw=kw, hh=H, ww=W, relu=relu)
    out = pl.pallas_call(
        kernel,
        out_shape=jax.ShapeDtypeStruct((N, H, W, Cout_p), out_dtype),
        grid_spec=pltpu.PrefetchScalarGridSpec(
            num_scalar_prefetch=0,
            grid=(N, Cout_p // TCO),
            in_specs=[
                pl.BlockSpec((1, Hp, Wp, Cx_p), lambda n, j: (n, 0, 0, 0)),
                pl.BlockSpec((kh * kw, Cx_p, TCO), lambda n, j: (0, 0, j)),
                pl.BlockSpec((1, TCO), lambda n, j: (0, j)),
                pl.BlockSpec((1, TCO), lambda n, j: (0, j)),
            ],
            out_specs=pl.BlockSpec((1, H, W, TCO), lambda n, j: (n, 0, 0, j)),
        ),
        compiler_params=pltpu.CompilerParams(
            dimension_semantics=("parallel", "parallel")),
    )(xp, wp, scale_p, shift_p)
    return out


def _embed_1x1_as_3x3(w1x1):
    """(1,1,Cin,Cout) -> (3,3,Cin,Cout) with the weight at the center tap."""
    cin, cout = w1x1.shape[2], w1x1.shape[3]
    w = jnp.zeros((3, 3, cin, cout), w1x1.dtype)
    return w.at[1, 1].set(w1x1[0, 0])


# ----------------------------------------------------------------------------
# Deterministic parameter construction (PyTorch-layout conv weights/biases)
# ----------------------------------------------------------------------------

class KeyGen:
    def __init__(self, seed):
        self._key = jax.random.PRNGKey(seed)

    def __call__(self):
        self._key, sub = jax.random.split(self._key)
        return sub


def make_conv(kg, cin, cout, k):
    fan_in = cin * k * k
    w = jax.random.normal(kg(), (k, k, cin, cout), jnp.float32) / np.sqrt(fan_in)
    b = 0.01 * jax.random.normal(kg(), (cout,), jnp.float32)
    return w, b


def respath_block_params(kg, cin, cout):
    c2 = cout // 2
    w1, b1 = make_conv(kg, cin, c2, 3)   # conv1: 3x3 + BN + ReLU
    w2, b2 = make_conv(kg, cin, c2, 1)   # conv2: 1x1 + BN
    return dict(w1=w1, b1=b1, w2=w2, b2=b2)


def res_block_params(kg, cin, cout):
    c8, c4, c2 = cout // 8, cout // 4, cout // 2
    w1, b1 = make_conv(kg, cin, c8, 3)
    w2, b2 = make_conv(kg, c8, c8, 3)
    w3, b3 = make_conv(kg, c8, c4, 3)
    scw, scb = make_conv(kg, cin, c2, 1)
    return dict(w1=w1, b1=b1, w2=w2, b2=b2, w3=w3, b3=b3, scw=scw, scb=scb)


# ----------------------------------------------------------------------------
# Blocks (all eval-mode BN / ReLU passes folded into the conv epilogues)
# ----------------------------------------------------------------------------
#   Folding identities (valid because every eval-mode BN here is y = s*x with
#   s = BN_SCALE > 0, zero shift):
#     s * relu(z) == relu(s * z),   relu(relu(z)) == relu(z),
#     relu(a * relu(z)) == a * relu(z)  for a >= 0.

def respath_block_fwd(p, x):
    """conv3x3->BN->ReLU || conv1x1->BN, concat, ReLU->BN.

    Both channel groups reduce to relu(s^2 * (conv + b)), so the whole block is
    ONE fused conv: the 1x1 branch is embedded as the 3x3 center tap and its
    output channels appended.  No concat needed -- channel layout is already
    [branch1 | branch2].
    """
    s2 = BN_SCALE * BN_SCALE
    c_half = p['w1'].shape[3]
    w_comb = jnp.concatenate([p['w1'], _embed_1x1_as_3x3(p['w2'])], axis=3)
    scale = jnp.full((2 * c_half,), s2, jnp.float32)
    shift = jnp.concatenate([p['b1'], p['b2']]) * s2
    # (N,H,W,Cout_p) with 2*c_half valid channels; padded channels are zero.
    return conv2d_fused(x, w_comb, scale, shift, relu=True)


def res_block_fwd(p, x):
    """shortcut 1x1 || (conv1->conv2->conv3), path BN, concat, ReLU->BN.

    Final channel groups:
      shortcut: relu(s   * (sc(x)  + b_sc))
      p1:       relu(s^3 * (c1(x)  + b1))     ( = s^2 * canonical x_p1 )
      p2:       relu(s^3 * (c2(xp1)+ b2))
      p3:       relu(s^3 * (c3(xp2)+ b3))
    Call A emits [shortcut | p1-final] in one fused conv; calls B/C consume the
    s^2-scaled previous group directly and compensate in their epilogue scale
    (scale = s, shift = s^3 * b), so every call emits FINAL values and the
    closing concat is a pure copy.
    """
    s = BN_SCALE
    c_sc = p['scw'].shape[3]   # out//2
    c1 = p['w1'].shape[3]      # out//8
    c2 = p['w2'].shape[3]      # out//8
    c3 = p['w3'].shape[3]      # out//4

    # Call A: fused [shortcut 1x1 | conv1 3x3] on x.
    w_a = jnp.concatenate([_embed_1x1_as_3x3(p['scw']), p['w1']], axis=3)
    scale_a = jnp.concatenate([jnp.full((c_sc,), s, jnp.float32),
                               jnp.full((c1,), s ** 3, jnp.float32)])
    shift_a = jnp.concatenate([p['scb'] * s, p['b1'] * (s ** 3)])
    a = conv2d_fused(x, w_a, scale_a, shift_a, relu=True)
    # a channels: [0:c_sc] shortcut-final, [c_sc:c_sc+c1] p1-final (= s^2 * x_p1)

    # Call B: conv2 reads a's p1 channels in place (cin_offset), emits p2-final.
    b = conv2d_fused(a, p['w2'],
                     jnp.full((c2,), s, jnp.float32), p['b2'] * (s ** 3),
                     relu=True, cin_offset=c_sc)

    # Call C: conv3 reads b's p2 channels, emits p3-final.
    c = conv2d_fused(b, p['w3'],
                     jnp.full((c3,), s, jnp.float32), p['b3'] * (s ** 3),
                     relu=True, cin_offset=0)

    # TODO(synk): the final concat is still an XLA copy; writing B/C into
    #             channel offsets of A's buffer would need sub-128-lane stores.
    return jnp.concatenate([a[..., :c_sc + c1], b[..., :c2], c[..., :c3]],
                           axis=-1)


def res_path_params(kg, in_ch, out_ch):
    return dict(rp1=respath_block_params(kg, in_ch, out_ch),
                rp2=respath_block_params(kg, out_ch, out_ch),
                rp3=res_block_params(kg, out_ch, out_ch),
                rp4=res_block_params(kg, out_ch, out_ch))


def res_path_forward(params, x_nchw):
    x = jnp.transpose(x_nchw, (0, 2, 3, 1)).astype(jnp.float32)   # NCHW -> NHWC
    x = respath_block_fwd(params['rp1'], x)    # padded 128ch (64 valid)
    x = respath_block_fwd(params['rp2'], x)    # padded 128ch (64 valid)
    x = res_block_fwd(params['rp3'], x)        # exact 64ch
    x = res_block_fwd(params['rp4'], x)        # exact 64ch
    return jnp.transpose(x, (0, 3, 1, 2)).astype(jnp.float32)     # back to NCHW


if __name__ == "__main__":
    IN_CH, OUT_CH, HW, BATCH = 8, 64, 16, 2
    x = jax.random.normal(jax.random.PRNGKey(0),
                          (BATCH, IN_CH, HW, HW), jnp.float32)    # NCHW like PyTorch
    params = res_path_params(KeyGen(0), IN_CH, OUT_CH)
    fwd = jax.jit(res_path_forward)
    out = jax.block_until_ready(fwd(params, x))
    assert out.shape == (BATCH, OUT_CH, HW, HW), out.shape
    assert bool(jnp.all(jnp.isfinite(out)))
    print("KERNEL_OK")
</pallas_src>

<mosaic_0001>
module attributes {stable_mosaic.version = 11 : i64} {
  func.func @_conv_fused_kernel(%arg0: i32, %arg1: i32, %arg2: memref<1x18x18x128xbf16, #tpu.memory_space<vmem>>, %arg3: memref<9x128x128xbf16, #tpu.memory_space<vmem>>, %arg4: memref<1x128xf32, #tpu.memory_space<vmem>>, %arg5: memref<1x128xf32, #tpu.memory_space<vmem>>, %arg6: memref<1x16x16x128xbf16, #tpu.memory_space<vmem>>) attributes {dimension_semantics = [#tpu.dimension_semantics<parallel>, #tpu.dimension_semantics<parallel>], iteration_bounds = array<i64: 2, 1>, scalar_prefetch = 0 : i64, scratch_operands = 0 : i64, tpu.core_type = #tpu.core_type<tc>, window_params = [{transform_indices = @transform_0, window_bounds = array<i64: 1, 18, 18, 128>}, {transform_indices = @transform_1, window_bounds = array<i64: 9, 128, 128>}, {transform_indices = @transform_2, window_bounds = array<i64: 1, 128>}, {transform_indices = @transform_3, window_bounds = array<i64: 1, 128>}, {transform_indices = @transform_4, window_bounds = array<i64: 1, 16, 16, 128>}]} {
    %c0 = arith.constant 0 : index
    %c0_0 = arith.constant 0 : index
    %c0_1 = arith.constant 0 : index
    %c0_2 = arith.constant 0 : index
    %0 = vector.load %arg2[%c0, %c0_0, %c0_1, %c0_2] : memref<1x18x18x128xbf16, #tpu.memory_space<vmem>>, vector<1x18x18x128xbf16>
    %1 = vector.shape_cast %0 : vector<1x18x18x128xbf16> to vector<18x18x128xbf16>
    %cst = arith.constant 0.000000e+00 : f32
    %2 = vector.broadcast %cst : f32 to vector<256x128xf32>
    %3 = vector.extract_strided_slice %1 {offsets = [0, 0, 0], sizes = [16, 16, 128], strides = [1, 1, 1]} : vector<18x18x128xbf16> to vector<16x16x128xbf16>
    %4 = vector.shape_cast %3 : vector<16x16x128xbf16> to vector<256x128xbf16>
    %c0_3 = arith.constant 0 : index
    %c0_4 = arith.constant 0 : index
    %c0_5 = arith.constant 0 : index
    %5 = vector.load %arg3[%c0_3, %c0_4, %c0_5] : memref<9x128x128xbf16, #tpu.memory_space<vmem>>, vector<1x128x128xbf16>
    %6 = vector.shape_cast %5 : vector<1x128x128xbf16> to vector<128x128xbf16>
    %cst_6 = arith.constant dense<0.000000e+00> : vector<256x128xf32>
    %7 = tpu.matmul %4, %6, %cst_6 {dimension_numbers = #tpu.dot_dimension_numbers<[1], [0], [0], [1], [0, 0, 1, 1], [], []>} : vector<256x128xbf16>, vector<128x128xbf16>, vector<256x128xf32> -> vector<256x128xf32>
    %8 = arith.addf %2, %7 : vector<256x128xf32>
    %9 = vector.extract_strided_slice %1 {offsets = [0, 1, 0], sizes = [16, 16, 128], strides = [1, 1, 1]} : vector<18x18x128xbf16> to vector<16x16x128xbf16>
    %10 = vector.shape_cast %9 : vector<16x16x128xbf16> to vector<256x128xbf16>
    %c1 = arith.constant 1 : index
    %c0_7 = arith.constant 0 : index
    %c0_8 = arith.constant 0 : index
    %11 = vector.load %arg3[%c1, %c0_7, %c0_8] : memref<9x128x128xbf16, #tpu.memory_space<vmem>>, vector<1x128x128xbf16>
    %12 = vector.shape_cast %11 : vector<1x128x128xbf16> to vector<128x128xbf16>
    %cst_9 = arith.constant dense<0.000000e+00> : vector<256x128xf32>
    %13 = tpu.matmul %10, %12, %cst_9 {dimension_numbers = #tpu.dot_dimension_numbers<[1], [0], [0], [1], [0, 0, 1, 1], [], []>} : vector<256x128xbf16>, vector<128x128xbf16>, vector<256x128xf32> -> vector<256x128xf32>
    %14 = arith.addf %8, %13 : vector<256x128xf32>
    %15 = vector.extract_strided_slice %1 {offsets = [0, 2, 0], sizes = [16, 16, 128], strides = [1, 1, 1]} : vector<18x18x128xbf16> to vector<16x16x128xbf16>
    %16 = vector.shape_cast %15 : vector<16x16x128xbf16> to vector<256x128xbf16>
    %c2 = arith.constant 2 : index
    %c0_10 = arith.constant 0 : index
    %c0_11 = arith.constant 0 : index
    %17 = vector.load %arg3[%c2, %c0_10, %c0_11] : memref<9x128x128xbf16, #tpu.memory_space<vmem>>, vector<1x128x128xbf16>
    %18 = vector.shape_cast %17 : vector<1x128x128xbf16> to vector<128x128xbf16>
    %cst_12 = arith.constant dense<0.000000e+00> : vector<256x128xf32>
    %19 = tpu.matmul %16, %18, %cst_12 {dimension_numbers = #tpu.dot_dimension_numbers<[1], [0], [0], [1], [0, 0, 1, 1], [], []>} : vector<256x128xbf16>, vector<128x128xbf16>, vector<256x128xf32> -> vector<256x128xf32>
    %20 = arith.addf %14, %19 : vector<256x128xf32>
    %21 = vector.extract_strided_slice %1 {offsets = [1, 0, 0], sizes = [16, 16, 128], strides = [1, 1, 1]} : vector<18x18x128xbf16> to vector<16x16x128xbf16>
    %22 = vector.shape_cast %21 : vector<16x16x128xbf16> to vector<256x128xbf16>
    %c3 = arith.constant 3 : index
    %c0_13 = arith.constant 0 : index
    %c0_14 = arith.constant 0 : index
    %23 = vector.load %arg3[%c3, %c0_13, %c0_14] : memref<9x128x128xbf16, #tpu.memory_space<vmem>>, vector<1x128x128xbf16>
    %24 = vector.shape_cast %23 : vector<1x128x128xbf16> to vector<128x128xbf16>
    %cst_15 = arith.constant dense<0.000000e+00> : vector<256x128xf32>
    %25 = tpu.matmul %22, %24, %cst_15 {dimension_numbers = #tpu.dot_dimension_numbers<[1], [0], [0], [1], [0, 0, 1, 1], [], []>} : vector<256x128xbf16>, vector<128x128xbf16>, vector<256x128xf32> -> vector<256x128xf32>
    %26 = arith.addf %20, %25 : vector<256x128xf32>
    %27 = vector.extract_strided_slice %1 {offsets = [1, 1, 0], sizes = [16, 16, 128], strides = [1, 1, 1]} : vector<18x18x128xbf16> to vector<16x16x128xbf16>
    %28 = vector.shape_cast %27 : vector<16x16x128xbf16> to vector<256x128xbf16>
    %c4 = arith.constant 4 : index
    %c0_16 = arith.constant 0 : index
    %c0_17 = arith.constant 0 : index
    %29 = vector.load %arg3[%c4, %c0_16, %c0_17] : memref<9x128x128xbf16, #tpu.memory_space<vmem>>, vector<1x128x128xbf16>
    %30 = vector.shape_cast %29 : vector<1x128x128xbf16> to vector<128x128xbf16>
    %cst_18 = arith.constant dense<0.000000e+00> : vector<256x128xf32>
    %31 = tpu.matmul %28, %30, %cst_18 {dimension_numbers = #tpu.dot_dimension_numbers<[1], [0], [0], [1], [0, 0, 1, 1], [], []>} : vector<256x128xbf16>, vector<128x128xbf16>, vector<256x128xf32> -> vector<256x128xf32>
    %32 = arith.addf %26, %31 : vector<256x128xf32>
    %33 = vector.extract_strided_slice %1 {offsets = [1, 2, 0], sizes = [16, 16, 128], strides = [1, 1, 1]} : vector<18x18x128xbf16> to vector<16x16x128xbf16>
    %34 = vector.shape_cast %33 : vector<16x16x128xbf16> to vector<256x128xbf16>
    %c5 = arith.constant 5 : index
    %c0_19 = arith.constant 0 : index
    %c0_20 = arith.constant 0 : index
    %35 = vector.load %arg3[%c5, %c0_19, %c0_20] : memref<9x128x128xbf16, #tpu.memory_space<vmem>>, vector<1x128x128xbf16>
    %36 = vector.shape_cast %35 : vector<1x128x128xbf16> to vector<128x128xbf16>
    %cst_21 = arith.constant dense<0.000000e+00> : vector<256x128xf32>
    %37 = tpu.matmul %34, %36, %cst_21 {dimension_numbers = #tpu.dot_dimension_numbers<[1], [0], [0], [1], [0, 0, 1, 1], [], []>} : vector<256x128xbf16>, vector<128x128xbf16>, vector<256x128xf32> -> vector<256x128xf32>
    %38 = arith.addf %32, %37 : vector<256x128xf32>
    %39 = vector.extract_strided_slice %1 {offsets = [2, 0, 0], sizes = [16, 16, 128], strides = [1, 1, 1]} : vector<18x18x128xbf16> to vector<16x16x128xbf16>
    %40 = vector.shape_cast %39 : vector<16x16x128xbf16> to vector<256x128xbf16>
    %c6 = arith.constant 6 : index
    %c0_22 = arith.constant 0 : index
    %c0_23 = arith.constant 0 : index
    %41 = vector.load %arg3[%c6, %c0_22, %c0_23] : memref<9x128x128xbf16, #tpu.memory_space<vmem>>, vector<1x128x128xbf16>
    %42 = vector.shape_cast %41 : vector<1x128x128xbf16> to vector<128x128xbf16>
    %cst_24 = arith.constant dense<0.000000e+00> : vector<256x128xf32>
    %43 = tpu.matmul %40, %42, %cst_24 {dimension_numbers = #tpu.dot_dimension_numbers<[1], [0], [0], [1], [0, 0, 1, 1], [], []>} : vector<256x128xbf16>, vector<128x128xbf16>, vector<256x128xf32> -> vector<256x128xf32>
    %44 = arith.addf %38, %43 : vector<256x128xf32>
    %45 = vector.extract_strided_slice %1 {offsets = [2, 1, 0], sizes = [16, 16, 128], strides = [1, 1, 1]} : vector<18x18x128xbf16> to vector<16x16x128xbf16>
    %46 = vector.shape_cast %45 : vector<16x16x128xbf16> to vector<256x128xbf16>
    %c7 = arith.constant 7 : index
    %c0_25 = arith.constant 0 : index
    %c0_26 = arith.constant 0 : index
    %47 = vector.load %arg3[%c7, %c0_25, %c0_26] : memref<9x128x128xbf16, #tpu.memory_space<vmem>>, vector<1x128x128xbf16>
    %48 = vector.shape_cast %47 : vector<1x128x128xbf16> to vector<128x128xbf16>
    %cst_27 = arith.constant dense<0.000000e+00> : vector<256x128xf32>
    %49 = tpu.matmul %46, %48, %cst_27 {dimension_numbers = #tpu.dot_dimension_numbers<[1], [0], [0], [1], [0, 0, 1, 1], [], []>} : vector<256x128xbf16>, vector<128x128xbf16>, vector<256x128xf32> -> vector<256x128xf32>
    %50 = arith.addf %44, %49 : vector<256x128xf32>
    %51 = vector.extract_strided_slice %1 {offsets = [2, 2, 0], sizes = [16, 16, 128], strides = [1, 1, 1]} : vector<18x18x128xbf16> to vector<16x16x128xbf16>
    %52 = vector.shape_cast %51 : vector<16x16x128xbf16> to vector<256x128xbf16>
    %c8 = arith.constant 8 : index
    %c0_28 = arith.constant 0 : index
    %c0_29 = arith.constant 0 : index
    %53 = vector.load %arg3[%c8, %c0_28, %c0_29] : memref<9x128x128xbf16, #tpu.memory_space<vmem>>, vector<1x128x128xbf16>
    %54 = vector.shape_cast %53 : vector<1x128x128xbf16> to vector<128x128xbf16>
    %cst_30 = arith.constant dense<0.000000e+00> : vector<256x128xf32>
    %55 = tpu.matmul %52, %54, %cst_30 {dimension_numbers = #tpu.dot_dimension_numbers<[1], [0], [0], [1], [0, 0, 1, 1], [], []>} : vector<256x128xbf16>, vector<128x128xbf16>, vector<256x128xf32> -> vector<256x128xf32>
    %56 = arith.addf %50, %55 : vector<256x128xf32>
    %c0_31 = arith.constant 0 : index
    %c0_32 = arith.constant 0 : index
    %57 = vector.load %arg4[%c0_31, %c0_32] : memref<1x128xf32, #tpu.memory_space<vmem>>, vector<1x128xf32>
    %58 = vector.broadcast %57 : vector<1x128xf32> to vector<256x128xf32>
    %59 = arith.mulf %56, %58 : vector<256x128xf32>
    %c0_33 = arith.constant 0 : index
    %c0_34 = arith.constant 0 : index
    %60 = vector.load %arg5[%c0_33, %c0_34] : memref<1x128xf32, #tpu.memory_space<vmem>>, vector<1x128xf32>
    %61 = vector.broadcast %60 : vector<1x128xf32> to vector<256x128xf32>
    %62 = arith.addf %59, %61 : vector<256x128xf32>
    %cst_35 = arith.constant 0.000000e+00 : f32
    %63 = vector.broadcast %cst_35 : f32 to vector<256x128xf32>
    %64 = arith.maximumf %62, %63 : vector<256x128xf32>
    %65 = vector.shape_cast %64 : vector<256x128xf32> to vector<16x16x128xf32>
    %66 = arith.truncf %65 : vector<16x16x128xf32> to vector<16x16x128xbf16>
    %c0_36 = arith.constant 0 : index
    %c0_37 = arith.constant 0 : index
    %c0_38 = arith.constant 0 : index
    %c0_39 = arith.constant 0 : index
    %67 = vector.load %arg6[%c0_36, %c0_37, %c0_38, %c0_39] : memref<1x16x16x128xbf16, #tpu.memory_space<vmem>>, vector<1x16x16x128xbf16>
    %68 = vector.shape_cast %67 : vector<1x16x16x128xbf16> to vector<16x16x128xbf16>
    %69 = vector.shape_cast %66 : vector<16x16x128xbf16> to vector<1x16x16x128xbf16>
    tpu.vector_store %arg6[%c0_36, %c0_37, %c0_38, %c0_39], %69 {strides = array<i32>} : memref<1x16x16x128xbf16, #tpu.memory_space<vmem>>, vector<1x16x16x128xbf16>,
    return
  }
  func.func @transform_0(%arg0: i32, %arg1: i32) -> (i32, i32, i32, i32) {
    %c0_i32 = arith.constant 0 : i32
    %c0_i32_0 = arith.constant 0 : i32
    %c0_i32_1 = arith.constant 0 : i32
    %c0_i32_2 = arith.constant 0 : i32
    return %arg0, %c0_i32, %c0_i32_0, %c0_i32_1 : i32, i32, i32, i32
  }
  func.func @transform_1(%arg0: i32, %arg1: i32) -> (i32, i32, i32) {
    %c0_i32 = arith.constant 0 : i32
    %c0_i32_0 = arith.constant 0 : i32
    %c0_i32_1 = arith.constant 0 : i32
    return %c0_i32, %c0_i32_0, %arg1 : i32, i32, i32
  }
  func.func @transform_2(%arg0: i32, %arg1: i32) -> (i32, i32) {
    %c0_i32 = arith.constant 0 : i32
    %c0_i32_0 = arith.constant 0 : i32
    return %c0_i32, %arg1 : i32, i32
  }
  func.func @transform_3(%arg0: i32, %arg1: i32) -> (i32, i32) {
    %c0_i32 = arith.constant 0 : i32
    %c0_i32_0 = arith.constant 0 : i32
    return %c0_i32, %arg1 : i32, i32
  }
  func.func @transform_4(%arg0: i32, %arg1: i32) -> (i32, i32, i32, i32) {
    %c0_i32 = arith.constant 0 : i32
    %c0_i32_0 = arith.constant 0 : i32
    %c0_i32_1 = arith.constant 0 : i32
    return %arg0, %c0_i32, %c0_i32_0, %arg1 : i32, i32, i32, i32
  }
}

</mosaic_0001>

<llo_original>
// kernel: res_path_forward.8
$region0: #{res_path_forward.8}
  #allocation0 [shape = 'u32[]', space=smem, size = 0x4, offset = 0x4, fixed_abs, tag = 'smem constant byte address 0x4 - core index']
  #allocation1 [shape = 'u32[72,128]{1,0:T(1,128)}', space=vmem, size = 0x9000, scoped, tag = 'internal scratch']
  %s0 = inlined_call_operand.vmem [shape: bf16[2,18,18,128], index: 0, kind: input, shape index: {}]
  %s1 = inlined_call_operand.vmem [shape: bf16[9,128,128], index: 1, kind: input, shape index: {}]
  %s2 = inlined_call_operand.vmem [shape: f32[1,128], index: 2, kind: input, shape index: {}]
  %s3 = inlined_call_operand.vmem [shape: f32[1,128], index: 3, kind: input, shape index: {}]
  %s4 = inlined_call_operand.vmem [shape: bf16[2,16,16,128], index: 4, kind: output, shape index: {}]
  %s5 = sld [smem:[#allocation0]]
  $region49: #{res_path_forward.8} parent=0
    _
  %s7 = ssub.s32 1, %s5
  %s8 = scalar_select 0, %s7, %s5
  loop: start=0, step=1, limit=4
  $region2: #{res_path_forward.8} parent=0 // loop_pre_header
    _
  $region3: #{res_path_forward.8} parent=0 // loop_header
    %s10 = sphi 0, %s14
    %p11 = scmp.ge.s32.totalorder %s10, 4
    %s17 = sphi 0, %s29
    %s18 = sphi 0, %s25
    %s19 = sphi 0, %s17
    %s20 = sphi 0, %s18
    %s21 = sphi 0, %s19
    %s22 = sphi 0, %s20
    %s32 = sphi 0, %s34
    %s35 = sphi 0, %s32
    %s36 = sphi 0, %s35
    %s52 = sphi 0, %s36
    %s58 = sphi 0, %s60
    %s61 = sphi 0, %s58
    %s62 = sphi 0, %s61
    %s78 = sphi 0, %s62
    %s84 = sphi 0, %s86
    %s87 = sphi 0, %s84
    %s88 = sphi 0, %s87
    %s104 = sphi 0, %s88
    %s110 = sphi 0, %s112
    %s113 = sphi 0, %s110
    %s114 = sphi 0, %s113
    %s130 = sphi 0, %s114
    %s138 = sphi 0, %s140
    %s141 = sphi 0, %s138
    %s142 = sphi 0, %s141
    %s158 = sphi 0, %s142
  $region4: #{res_path_forward.8} parent=0 // loop_header_branch
    %13 = sbr.rel (%p11) target = $region8
  $region5: #{res_path_forward.8} parent=0 // loop_body
    %s15 = ssub.s32 %s10, 1
    %s16 = ssub.s32 %s10, 2
    %s23 = sadd.s32 1, %s18
    %p24 = scmp.ge.s32.totalorder %s23, 1
    %s25 = scalar_select %p24, 0, %s23
    %s26 = sadd.s32 1, %s17
    %s27 = scalar_select %p24, %s26, %s17
    %p28 = scmp.ge.s32.totalorder %s27, 2
    %s29 = scalar_select %p28, 0, %s27
    %s30 = ssub.s32 %s17, %s29
    %p31 = scmp.eq.s32.totalorder %s30, 0
    %s33 = sadd.s32 %s32, 1
    %s34 = scalar_select %p31, %s32, %s33
    %p37 = pneg %p31
    %p38 = scmp.eq.s32.totalorder %s10, 1
    %p39 = por %p37, %p38
    %p40 = scmp.ne.s32.totalorder %s32, %s35
    %p41 = scmp.eq.s32.totalorder %s10, 0
    %p42 = por %p40, %p41
    %p43 = scmp.ne.s32.totalorder %s32, %s35
    %p44 = scmp.eq.s32.totalorder %s15, 1
    %p45 = por %p43, %p44
    %p46 = scmp.ne.s32.totalorder %s35, %s36
    %p47 = scmp.eq.s32.totalorder %s15, 0
    %p48 = por %p46, %p47
    %p49 = scmp.ne.s32.totalorder %s35, %s36
    %p50 = scmp.eq.s32.totalorder %s16, 1
    %p51 = por %p49, %p50
    %p53 = scmp.ne.s32.totalorder %s36, %s52
    %p54 = scmp.eq.s32.totalorder %s16, 0
    %p55 = por %p53, %p54
    %s56 = ssub.s32 %s18, %s25
    %p57 = scmp.eq.s32.totalorder %s56, 0
    %s59 = sadd.s32 %s58, 1
    %s60 = scalar_select %p57, %s58, %s59
    %p63 = pneg %p57
    %p64 = scmp.eq.s32.totalorder %s10, 1
    %p65 = por %p63, %p64
    %p66 = scmp.ne.s32.totalorder %s58, %s61
    %p67 = scmp.eq.s32.totalorder %s10, 0
    %p68 = por %p66, %p67
    %p69 = scmp.ne.s32.totalorder %s58, %s61
    %p70 = scmp.eq.s32.totalorder %s15, 1
    %p71 = por %p69, %p70
    %p72 = scmp.ne.s32.totalorder %s61, %s62
    %p73 = scmp.eq.s32.totalorder %s15, 0
    %p74 = por %p72, %p73
    %p75 = scmp.ne.s32.totalorder %s61, %s62
    %p76 = scmp.eq.s32.totalorder %s16, 1
    %p77 = por %p75, %p76
    %p79 = scmp.ne.s32.totalorder %s62, %s78
    %p80 = scmp.eq.s32.totalorder %s16, 0
    %p81 = por %p79, %p80
    %s82 = ssub.s32 %s18, %s25
    %p83 = scmp.eq.s32.totalorder %s82, 0
    %s85 = sadd.s32 %s84, 1
    %s86 = scalar_select %p83, %s84, %s85
    %p89 = pneg %p83
    %p90 = scmp.eq.s32.totalorder %s10, 1
    %p91 = por %p89, %p90
    %p92 = scmp.ne.s32.totalorder %s84, %s87
    %p93 = scmp.eq.s32.totalorder %s10, 0
    %p94 = por %p92, %p93
    %p95 = scmp.ne.s32.totalorder %s84, %s87
    %p96 = scmp.eq.s32.totalorder %s15, 1
    %p97 = por %p95, %p96
    %p98 = scmp.ne.s32.totalorder %s87, %s88
    %p99 = scmp.eq.s32.totalorder %s15, 0
    %p100 = por %p98, %p99
    %p101 = scmp.ne.s32.totalorder %s87, %s88
    %p102 = scmp.eq.s32.totalorder %s16, 1
    %p103 = por %p101, %p102
    %p105 = scmp.ne.s32.totalorder %s88, %s104
    %p106 = scmp.eq.s32.totalorder %s16, 0
    %p107 = por %p105, %p106
    %s108 = ssub.s32 %s18, %s25
    %p109 = scmp.eq.s32.totalorder %s108, 0
    %s111 = sadd.s32 %s110, 1
    %s112 = scalar_select %p109, %s110, %s111
    %p115 = pneg %p109
    %p116 = scmp.eq.s32.totalorder %s10, 1
    %p117 = por %p115, %p116
    %p118 = scmp.ne.s32.totalorder %s110, %s113
    %p119 = scmp.eq.s32.totalorder %s10, 0
    %p120 = por %p118, %p119
    %p121 = scmp.ne.s32.totalorder %s110, %s113
    %p122 = scmp.eq.s32.totalorder %s15, 1
    %p123 = por %p121, %p122
    %p124 = scmp.ne.s32.totalorder %s113, %s114
    %p125 = scmp.eq.s32.totalorder %s15, 0
    %p126 = por %p124, %p125
    %p127 = scmp.ne.s32.totalorder %s113, %s114
    %p128 = scmp.eq.s32.totalorder %s16, 1
    %p129 = por %p127, %p128
    %p131 = scmp.ne.s32.totalorder %s114, %s130
    %p132 = scmp.eq.s32.totalorder %s16, 0
    %p133 = por %p131, %p132
    %s134 = ssub.s32 %s17, %s29
    %s135 = ssub.s32 %s18, %s25
    %s136 = sor.u32 %s134, %s135
    %p137 = scmp.eq.s32.totalorder %s136, 0
    %s139 = sadd.s32 %s138, 1
    %s140 = scalar_select %p137, %s138, %s139
    %p143 = pneg %p137
    %p144 = scmp.eq.s32.totalorder %s10, 1
    %p145 = por %p143, %p144
    %p146 = scmp.ne.s32.totalorder %s138, %s141
    %p147 = scmp.eq.s32.totalorder %s10, 0
    %p148 = por %p146, %p147
    %p149 = scmp.ne.s32.totalorder %s138, %s141
    %p150 = scmp.eq.s32.totalorder %s15, 1
    %p151 = por %p149, %p150
    %p152 = scmp.ne.s32.totalorder %s141, %s142
    %p153 = scmp.eq.s32.totalorder %s15, 0
    %p154 = por %p152, %p153
    %p155 = scmp.ne.s32.totalorder %s141, %s142
    %p156 = scmp.eq.s32.totalorder %s16, 1
    %p157 = por %p155, %p156
    %p159 = scmp.ne.s32.totalorder %s142, %s158
    %p160 = scmp.eq.s32.totalorder %s16, 0
    %p161 = por %p159, %p160
    %p162 = scmp.le.s32.totalorder 1, %s10
    %p163 = scmp.lt.s32.totalorder %s10, 3
    %p164 = pnand %p162, %p163
    %p165 = pneg %p164
    // Predicated region
    $region9: #{res_path_forward.8} parent=5 // pred_check
      _
    $region10: #{res_path_forward.8} parent=5 // pred_check_branch
      %167 = sbr.rel (%p164) target = $region12
    $region11: #{res_path_forward.8} parent=5 // pred_region
      %s168 = ssub.s32 %s10, 1
      // Predicated region
      $region13: #{res_path_forward.8} parent=11 // pred_check
        %p169 = pneg %p74
      $region14: #{res_path_forward.8} parent=11 // pred_check_branch
        %171 = sbr.rel (%p169) target = $region16
      $region15: #{res_path_forward.8} parent=11 // pred_region
        %p172 = scmp.lt.s32.totalorder %s20, 0
        %s173 = scalar_select %p172, %s20, 0
        %s174 = smul.addr %s173, 4
        %s175 = scalar_lea.vmem %s1, %s174
      $region16: #{res_path_forward.8} parent=11 // pred_fallthru
        _
      // Predicated region
      $region17: #{res_path_forward.8} parent=11 // pred_check
        %p176 = pneg %p100
      $region18: #{res_path_forward.8} parent=11 // pred_check_branch
        %178 = sbr.rel (%p176) target = $region20
      $region19: #{res_path_forward.8} parent=11 // pred_region
        %p179 = scmp.lt.s32.totalorder %s20, 0
        %s180 = scalar_select %p179, %s20, 0
        %s181 = scalar_lea.vmem %s2, %s180
      $region20: #{res_path_forward.8} parent=11 // pred_fallthru
        _
      // Predicated region
      $region21: #{res_path_forward.8} parent=11 // pred_check
        %p182 = pneg %p126
      $region22: #{res_path_forward.8} parent=11 // pred_check_branch
        %184 = sbr.rel (%p182) target = $region24
      $region23: #{res_path_forward.8} parent=11 // pred_region
        %p185 = scmp.lt.s32.totalorder %s20, 0
        %s186 = scalar_select %p185, %s20, 0
        %s187 = scalar_lea.vmem %s3, %s186
      $region24: #{res_path_forward.8} parent=11 // pred_fallthru
        _
    $region12: #{res_path_forward.8} parent=5 // pred_fallthru
      _
    %p188 = scmp.lt.s32.totalorder %s10, 2
    // Predicated region
    $region25: #{res_path_forward.8} parent=5 // pred_check
      %p189 = pneg %p188
    $region26: #{res_path_forward.8} parent=5 // pred_check_branch
      %191 = sbr.rel (%p189) target = $region28
    $region27: #{res_path_forward.8} parent=5 // pred_region
      // Predicated region
      $region29: #{res_path_forward.8} parent=27 // pred_check
        %p192 = pneg %p42
      $region30: #{res_path_forward.8} parent=27 // pred_check_branch
        %194 = sbr.rel (%p192) target = $region32
      $region31: #{res_path_forward.8} parent=27 // pred_region
        %p195 = scmp.lt.s32.totalorder %s17, 1
        %s196 = scalar_select %p195, %s17, 1
        %s197 = smul.addr %s196, 54
        %s198 = smul.addr %s197, 4
        %s199 = scalar_lea.vmem %s0, %s198
      $region32: #{res_path_forward.8} parent=27 // pred_fallthru
        _
    $region28: #{res_path_forward.8} parent=5 // pred_fallthru
      _
    %p200 = scmp.le.s32.totalorder 1, %s10
    %p201 = scmp.lt.s32.totalorder %s10, 3
    %p202 = pnand %p200, %p201
    %p203 = pneg %p202
    // Predicated region
    $region33: #{res_path_forward.8} parent=5 // pred_check
      _
    $region34: #{res_path_forward.8} parent=5 // pred_check_branch
      %205 = sbr.rel (%p202) target = $region36
    $region35: #{res_path_forward.8} parent=5 // pred_region
      %s206 = ssub.s32 %s10, 1
      %p207 = scmp.lt.s32.totalorder %s19, 1
      %s208 = scalar_select %p207, %s19, 1
      %s209 = smul.addr %s208, 54
      %s210 = smul.addr %s209, 4
      %s211 = scalar_lea.vmem %s0, %s210
      %p212 = pneg %p48
      %p213 = pneg %p45
      %p214 = scmp.lt.s32.totalorder %s20, 0
      %s215 = scalar_select %p214, %s20, 0
      %s216 = smul.addr %s215, 4
      %s217 = scalar_lea.vmem %s1, %s216
      %p218 = pneg %p74
      %p219 = pneg %p71
      %p220 = scmp.lt.s32.totalorder %s20, 0
      %s221 = scalar_select %p220, %s20, 0
      %s222 = scalar_lea.vmem %s2, %s221
      %p223 = pneg %p100
      %p224 = pneg %p97
      %p225 = scmp.lt.s32.totalorder %s20, 0
      %s226 = scalar_select %p225, %s20, 0
      %s227 = scalar_lea.vmem %s3, %s226
      %p228 = pneg %p126
      %p229 = pneg %p123
      %p230 = pneg %p154
      %p231 = pneg %p151
      %p232 = scmp.lt.s32.totalorder %s19, 1
      %s233 = scalar_select %p232, %s19, 1
      %p234 = scmp.lt.s32.totalorder %s20, 0
      %s235 = scalar_select %p234, %s20, 0
      %s236 = smul.addr %s233, 32
      %s237 = sadd.s32 %s235, %s236
      %s238 = smul.addr %s237, 4
      %s239 = scalar_lea.vmem %s4, %s238
      %p240 = scmp.lt.s32.totalorder %s19, 1
      %s241 = scalar_select %p240, %s19, 1
      %s242 = smul.addr %s241, 54
      %s243 = smul.addr %s242, 4
      %s244 = scalar_lea.vmem %s0, %s243
      %p245 = scmp.lt.s32.totalorder %s20, 0
      %s246 = scalar_select %p245, %s20, 0
      %s247 = smul.addr %s246, 4
      %s248 = scalar_lea.vmem %s1, %s247
      %p249 = scmp.lt.s32.totalorder %s20, 0
      %s250 = scalar_select %p249, %s20, 0
      %s251 = scalar_lea.vmem %s2, %s250
      %p252 = scmp.lt.s32.totalorder %s20, 0
      %s253 = scalar_select %p252, %s20, 0
      %s254 = scalar_lea.vmem %s3, %s253
      %p255 = scmp.lt.s32.totalorder %s19, 1
      %s256 = scalar_select %p255, %s19, 1
      %p257 = scmp.lt.s32.totalorder %s20, 0
      %s258 = scalar_select %p257, %s20, 0
      %s259 = smul.addr %s256, 32
      %s260 = sadd.s32 %s258, %s259
      %s261 = smul.addr %s260, 4
      %s262 = scalar_lea.vmem %s4, %s261
      %v263 = vld [vmem:[%s244] sm:$0xf]
      %v264 = vld [vmem:[%s244 + $0x4] sm:$0xf]
      %v265 = vld [vmem:[%s244 + $0x8] sm:$0x1]
      %v266 = vld [vmem:[%s244 + $0xc] sm:$0xf]
      %v267 = vld [vmem:[%s244 + $0x10] sm:$0xf]
      %v268 = vld [vmem:[%s244 + $0x14] sm:$0x1]
      %v269 = vld [vmem:[%s244 + $0x18] sm:$0xf]
      %v270 = vld [vmem:[%s244 + $0x1c] sm:$0xf]
      %v271 = vld [vmem:[%s244 + $0x20] sm:$0x1]
      %v272 = vld [vmem:[%s244 + $0x24] sm:$0xf]
      %v273 = vld [vmem:[%s244 + $0x28] sm:$0xf]
      %v274 = vld [vmem:[%s244 + $0x2c] sm:$0x1]
      %v275 = vld [vmem:[%s244 + $0x30] sm:$0xf]
      %v276 = vld [vmem:[%s244 + $0x34] sm:$0xf]
      %v277 = vld [vmem:[%s244 + $0x38] sm:$0x1]
      %v278 = vld [vmem:[%s244 + $0x3c] sm:$0xf]
      %v279 = vld [vmem:[%s244 + $0x40] sm:$0xf]
      %v280 = vld [vmem:[%s244 + $0x44] sm:$0x1]
      %v281 = vld [vmem:[%s244 + $0x48] sm:$0xf]
      %v282 = vld [vmem:[%s244 + $0x4c] sm:$0xf]
      %v283 = vld [vmem:[%s244 + $0x50] sm:$0x1]
      %v284 = vld [vmem:[%s244 + $0x54] sm:$0xf]
      %v285 = vld [vmem:[%s244 + $0x58] sm:$0xf]
      %v286 = vld [vmem:[%s244 + $0x5c] sm:$0x1]
      %v287 = vld [vmem:[%s244 + $0x60] sm:$0xf]
      %v288 = vld [vmem:[%s244 + $0x64] sm:$0xf]
      %v289 = vld [vmem:[%s244 + $0x68] sm:$0x1]
      %v290 = vld [vmem:[%s244 + $0x6c] sm:$0xf]
      %v291 = vld [vmem:[%s244 + $0x70] sm:$0xf]
      %v292 = vld [vmem:[%s244 + $0x74] sm:$0x1]
      %v293 = vld [vmem:[%s244 + $0x78] sm:$0xf]
      %v294 = vld [vmem:[%s244 + $0x7c] sm:$0xf]
      %v295 = vld [vmem:[%s244 + $0x80] sm:$0x1]
      %v296 = vld [vmem:[%s244 + $0x84] sm:$0xf]
      %v297 = vld [vmem:[%s244 + $0x88] sm:$0xf]
      %v298 = vld [vmem:[%s244 + $0x8c] sm:$0x1]
      %v299 = vld [vmem:[%s244 + $0x90] sm:$0xf]
      %v300 = vld [vmem:[%s244 + $0x94] sm:$0xf]
      %v301 = vld [vmem:[%s244 + $0x98] sm:$0x1]
      %v302 = vld [vmem:[%s244 + $0x9c] sm:$0xf]
      %v303 = vld [vmem:[%s244 + $0xa0] sm:$0xf]
      %v304 = vld [vmem:[%s244 + $0xa4] sm:$0x1]
      %v305 = vld [vmem:[%s244 + $0xa8] sm:$0xf]
      %v306 = vld [vmem:[%s244 + $0xac] sm:$0xf]
      %v307 = vld [vmem:[%s244 + $0xb0] sm:$0x1]
      %v308 = vld [vmem:[%s244 + $0xb4] sm:$0xf]
      %v309 = vld [vmem:[%s244 + $0xb8] sm:$0xf]
      %v310 = vld [vmem:[%s244 + $0xbc] sm:$0x1]
      %v311 = vld [vmem:[%s244 + $0xc0] sm:$0xf]
      %v312 = vld [vmem:[%s244 + $0xc4] sm:$0xf]
      %v313 = vld [vmem:[%s244 + $0xc8] sm:$0x1]
      %v314 = vld [vmem:[%s244 + $0xcc] sm:$0xf]
      %v315 = vld [vmem:[%s244 + $0xd0] sm:$0xf]
      %v316 = vld [vmem:[%s244 + $0xd4] sm:$0x1]
      %v317 = vld [vmem:[%s248] sm:$0xf]
      %v318 = vld [vmem:[%s248 + $0x4] sm:$0xf]
      %v319 = vld [vmem:[%s248 + $0x8] sm:$0xf]
      %v320 = vld [vmem:[%s248 + $0xc] sm:$0xf]
      %v321 = vld [vmem:[%s248 + $0x10] sm:$0xf]
      %v322 = vld [vmem:[%s248 + $0x14] sm:$0xf]
      %v323 = vld [vmem:[%s248 + $0x18] sm:$0xf]
      %v324 = vld [vmem:[%s248 + $0x1c] sm:$0xf]
      %v325 = vld [vmem:[%s248 + $0x20] sm:$0xf]
      %v326 = vld [vmem:[%s248 + $0x24] sm:$0xf]
      %v327 = vld [vmem:[%s248 + $0x28] sm:$0xf]
      %v328 = vld [vmem:[%s248 + $0x2c] sm:$0xf]
      %v329 = vld [vmem:[%s248 + $0x30] sm:$0xf]
      %v330 = vld [vmem:[%s248 + $0x34] sm:$0xf]
      %v331 = vld [vmem:[%s248 + $0x38] sm:$0xf]
      %v332 = vld [vmem:[%s248 + $0x3c] sm:$0xf]
      %vm333 = vsmask.f32 3328
      %vm334 = vsmask.f32 7440
      %vm335 = vmor %vm333, %vm334
      %v337 = vshrl.u32 %v263, 16
      %v339 = vrot.slane %v337, 4
      %v340 = vshll.u32 %v263, 16
      %v342 = vrot.slane %v340, 5
      %v343 = vor.u32 %v339, %v342
      %v344 = vrot.slane %v343, 4
      %v346 = vshll.u32 %v264, 16
      %v348 = vrot.slane %v346, 5
      %v349 = vsel %vm335, %v344, %v348
      %v350 = vshrl.u32 %v264, 16
      %v352 = vrot.slane %v350, 4
      %v353 = vor.u32 %v352, %v348
      %v354 = vrot.slane %v353, 4
      %v356 = vshll.u32 %v265, 16
      %v358 = vrot.slane %v356, 5
      %v359 = vsel %vm335, %v354, %v358
      %v361 = vshrl.u32 %v266, 16
      %v363 = vrot.slane %v361, 4
      %v364 = vshll.u32 %v266, 16
      %v366 = vrot.slane %v364, 5
      %v367 = vor.u32 %v363, %v366
      %v368 = vrot.slane %v367, 4
      %v370 = vshll.u32 %v267, 16
      %v372 = vrot.slane %v370, 5
      %v373 = vsel %vm335, %v368, %v372
      %v374 = vshrl.u32 %v267, 16
      %v376 = vrot.slane %v374, 4
      %v377 = vor.u32 %v376, %v372
      %v378 = vrot.slane %v377, 4
      %v380 = vshll.u32 %v268, 16
      %v382 = vrot.slane %v380, 5
      %v383 = vsel %vm335, %v378, %v382
      %v385 = vshrl.u32 %v269, 16
      %v387 = vrot.slane %v385, 4
      %v388 = vshll.u32 %v269, 16
      %v390 = vrot.slane %v388, 5
      %v391 = vor.u32 %v387, %v390
      %v392 = vrot.slane %v391, 4
      %v394 = vshll.u32 %v270, 16
      %v396 = vrot.slane %v394, 5
      %v397 = vsel %vm335, %v392, %v396
      %v398 = vshrl.u32 %v270, 16
      %v400 = vrot.slane %v398, 4
      %v401 = vor.u32 %v400, %v396
      %v402 = vrot.slane %v401, 4
      %v404 = vshll.u32 %v271, 16
      %v406 = vrot.slane %v404, 5
      %v407 = vsel %vm335, %v402, %v406
      %v409 = vshrl.u32 %v272, 16
      %v411 = vrot.slane %v409, 4
      %v412 = vshll.u32 %v272, 16
      %v414 = vrot.slane %v412, 5
      %v415 = vor.u32 %v411, %v414
      %v416 = vrot.slane %v415, 4
      %v418 = vshll.u32 %v273, 16
      %v420 = vrot.slane %v418, 5
      %v421 = vsel %vm335, %v416, %v420
      %v422 = vshrl.u32 %v273, 16
      %v424 = vrot.slane %v422, 4
      %v425 = vor.u32 %v424, %v420
      %v426 = vrot.slane %v425, 4
      %v428 = vshll.u32 %v274, 16
      %v430 = vrot.slane %v428, 5
      %v431 = vsel %vm335, %v426, %v430
      %v433 = vshrl.u32 %v275, 16
      %v435 = vrot.slane %v433, 4
      %v436 = vshll.u32 %v275, 16
      %v438 = vrot.slane %v436, 5
      %v439 = vor.u32 %v435, %v438
      %v440 = vrot.slane %v439, 4
      %v442 = vshll.u32 %v276, 16
      %v444 = vrot.slane %v442, 5
      %v445 = vsel %vm335, %v440, %v444
      %v446 = vshrl.u32 %v276, 16
      %v448 = vrot.slane %v446, 4
      %v449 = vor.u32 %v448, %v444
      %v450 = vrot.slane %v449, 4
      %v452 = vshll.u32 %v277, 16
      %v454 = vrot.slane %v452, 5
      %v455 = vsel %vm335, %v450, %v454
      %v457 = vshrl.u32 %v278, 16
      %v459 = vrot.slane %v457, 4
      %v460 = vshll.u32 %v278, 16
      %v462 = vrot.slane %v460, 5
      %v463 = vor.u32 %v459, %v462
      %v464 = vrot.slane %v463, 4
      %v466 = vshll.u32 %v279, 16
      %v468 = vrot.slane %v466, 5
      %v469 = vsel %vm335, %v464, %v468
      %v470 = vshrl.u32 %v279, 16
      %v472 = vrot.slane %v470, 4
      %v473 = vor.u32 %v472, %v468
      %v474 = vrot.slane %v473, 4
      %v476 = vshll.u32 %v280, 16
      %v478 = vrot.slane %v476, 5
      %v479 = vsel %vm335, %v474, %v478
      %v481 = vshrl.u32 %v281, 16
      %v483 = vrot.slane %v481, 4
      %v484 = vshll.u32 %v281, 16
      %v486 = vrot.slane %v484, 5
      %v487 = vor.u32 %v483, %v486
      %v488 = vrot.slane %v487, 4
      %v490 = vshll.u32 %v282, 16
      %v492 = vrot.slane %v490, 5
      %v493 = vsel %vm335, %v488, %v492
      %v494 = vshrl.u32 %v282, 16
      %v496 = vrot.slane %v494, 4
      %v497 = vor.u32 %v496, %v492
      %v498 = vrot.slane %v497, 4
      %v500 = vshll.u32 %v283, 16
      %v502 = vrot.slane %v500, 5
      %v503 = vsel %vm335, %v498, %v502
      %v505 = vshrl.u32 %v284, 16
      %v507 = vrot.slane %v505, 4
      %v508 = vshll.u32 %v284, 16
      %v510 = vrot.slane %v508, 5
      %v511 = vor.u32 %v507, %v510
      %v512 = vrot.slane %v511, 4
      %v514 = vshll.u32 %v285, 16
      %v516 = vrot.slane %v514, 5
      %v517 = vsel %vm335, %v512, %v516
      %v518 = vshrl.u32 %v285, 16
      %v520 = vrot.slane %v518, 4
      %v521 = vor.u32 %v520, %v516
      %v522 = vrot.slane %v521, 4
      %v524 = vshll.u32 %v286, 16
      %v526 = vrot.slane %v524, 5
      %v527 = vsel %vm335, %v522, %v526
      %v529 = vshrl.u32 %v287, 16
      %v531 = vrot.slane %v529, 4
      %v532 = vshll.u32 %v287, 16
      %v534 = vrot.slane %v532, 5
      %v535 = vor.u32 %v531, %v534
      %v536 = vrot.slane %v535, 4
      %v538 = vshll.u32 %v288, 16
      %v540 = vrot.slane %v538, 5
      %v541 = vsel %vm335, %v536, %v540
      %v542 = vshrl.u32 %v288, 16
      %v544 = vrot.slane %v542, 4
      %v545 = vor.u32 %v544, %v540
      %v546 = vrot.slane %v545, 4
      %v548 = vshll.u32 %v289, 16
      %v550 = vrot.slane %v548, 5
      %v551 = vsel %vm335, %v546, %v550
      %v553 = vshrl.u32 %v290, 16
      %v555 = vrot.slane %v553, 4
      %v556 = vshll.u32 %v290, 16
      %v558 = vrot.slane %v556, 5
      %v559 = vor.u32 %v555, %v558
      %v560 = vrot.slane %v559, 4
      %v562 = vshll.u32 %v291, 16
      %v564 = vrot.slane %v562, 5
      %v565 = vsel %vm335, %v560, %v564
      %v566 = vshrl.u32 %v291, 16
      %v568 = vrot.slane %v566, 4
      %v569 = vor.u32 %v568, %v564
      %v570 = vrot.slane %v569, 4
      %v572 = vshll.u32 %v292, 16
      %v574 = vrot.slane %v572, 5
      %v575 = vsel %vm335, %v570, %v574
      %v577 = vshrl.u32 %v293, 16
      %v579 = vrot.slane %v577, 4
      %v580 = vshll.u32 %v293, 16
      %v582 = vrot.slane %v580, 5
      %v583 = vor.u32 %v579, %v582
      %v584 = vrot.slane %v583, 4
      %v586 = vshll.u32 %v294, 16
      %v588 = vrot.slane %v586, 5
      %v589 = vsel %vm335, %v584, %v588
      %v590 = vshrl.u32 %v294, 16
      %v592 = vrot.slane %v590, 4
      %v593 = vor.u32 %v592, %v588
      %v594 = vrot.slane %v593, 4
      %v596 = vshll.u32 %v295, 16
      %v598 = vrot.slane %v596, 5
      %v599 = vsel %vm335, %v594, %v598
      %v601 = vshrl.u32 %v296, 16
      %v603 = vrot.slane %v601, 4
      %v604 = vshll.u32 %v296, 16
      %v606 = vrot.slane %v604, 5
      %v607 = vor.u32 %v603, %v606
      %v608 = vrot.slane %v607, 4
      %v610 = vshll.u32 %v297, 16
      %v612 = vrot.slane %v610, 5
      %v613 = vsel %vm335, %v608, %v612
      %v614 = vshrl.u32 %v297, 16
      %v616 = vrot.slane %v614, 4
      %v617 = vor.u32 %v616, %v612
      %v618 = vrot.slane %v617, 4
      %v620 = vshll.u32 %v298, 16
      %v622 = vrot.slane %v620, 5
      %v623 = vsel %vm335, %v618, %v622
      %v625 = vshrl.u32 %v299, 16
      %v627 = vrot.slane %v625, 4
      %v628 = vshll.u32 %v299, 16
      %v630 = vrot.slane %v628, 5
      %v631 = vor.u32 %v627, %v630
      %v632 = vrot.slane %v631, 4
      %v634 = vshll.u32 %v300, 16
      %v636 = vrot.slane %v634, 5
      %v637 = vsel %vm335, %v632, %v636
      %v638 = vshrl.u32 %v300, 16
      %v640 = vrot.slane %v638, 4
      %v641 = vor.u32 %v640, %v636
      %v642 = vrot.slane %v641, 4
      %v644 = vshll.u32 %v301, 16
      %v646 = vrot.slane %v644, 5
      %v647 = vsel %vm335, %v642, %v646
      %v649 = vshrl.u32 %v302, 16
      %v651 = vrot.slane %v649, 4
      %v652 = vshll.u32 %v302, 16
      %v654 = vrot.slane %v652, 5
      %v655 = vor.u32 %v651, %v654
      %v656 = vrot.slane %v655, 4
      %v658 = vshll.u32 %v303, 16
      %v660 = vrot.slane %v658, 5
      %v661 = vsel %vm335, %v656, %v660
      %v662 = vshrl.u32 %v303, 16
      %v664 = vrot.slane %v662, 4
      %v665 = vor.u32 %v664, %v660
      %v666 = vrot.slane %v665, 4
      %v668 = vshll.u32 %v304, 16
      %v670 = vrot.slane %v668, 5
      %v671 = vsel %vm335, %v666, %v670
      %v673 = vshrl.u32 %v305, 16
      %v675 = vrot.slane %v673, 4
      %v676 = vshll.u32 %v305, 16
      %v678 = vrot.slane %v676, 5
      %v679 = vor.u32 %v675, %v678
      %v680 = vrot.slane %v679, 4
      %v682 = vshll.u32 %v306, 16
      %v684 = vrot.slane %v682, 5
      %v685 = vsel %vm335, %v680, %v684
      %v686 = vshrl.u32 %v306, 16
      %v688 = vrot.slane %v686, 4
      %v689 = vor.u32 %v688, %v684
      %v690 = vrot.slane %v689, 4
      %v692 = vshll.u32 %v307, 16
      %v694 = vrot.slane %v692, 5
      %v695 = vsel %vm335, %v690, %v694
      %v697 = vshrl.u32 %v308, 16
      %v699 = vrot.slane %v697, 4
      %v700 = vshll.u32 %v308, 16
      %v702 = vrot.slane %v700, 5
      %v703 = vor.u32 %v699, %v702
      %v704 = vrot.slane %v703, 4
      %v706 = vshll.u32 %v309, 16
      %v708 = vrot.slane %v706, 5
      %v709 = vsel %vm335, %v704, %v708
      %v710 = vshrl.u32 %v309, 16
      %v712 = vrot.slane %v710, 4
      %v713 = vor.u32 %v712, %v708
      %v714 = vrot.slane %v713, 4
      %v716 = vshll.u32 %v310, 16
      %v718 = vrot.slane %v716, 5
      %v719 = vsel %vm335, %v714, %v718
      %s720 = scalar_lea.vmem %s248, 64
      %v721 = vld [vmem:[%s720] sm:$0xf]
      %v722 = vld [vmem:[%s720 + $0x4] sm:$0xf]
      %v723 = vld [vmem:[%s720 + $0x8] sm:$0xf]
      %v724 = vld [vmem:[%s720 + $0xc] sm:$0xf]
      %v725 = vld [vmem:[%s720 + $0x10] sm:$0xf]
      %v726 = vld [vmem:[%s720 + $0x14] sm:$0xf]
      %v727 = vld [vmem:[%s720 + $0x18] sm:$0xf]
      %v728 = vld [vmem:[%s720 + $0x1c] sm:$0xf]
      %v729 = vld [vmem:[%s720 + $0x20] sm:$0xf]
      %v730 = vld [vmem:[%s720 + $0x24] sm:$0xf]
      %v731 = vld [vmem:[%s720 + $0x28] sm:$0xf]
      %v732 = vld [vmem:[%s720 + $0x2c] sm:$0xf]
      %v733 = vld [vmem:[%s720 + $0x30] sm:$0xf]
      %v734 = vld [vmem:[%s720 + $0x34] sm:$0xf]
      %v735 = vld [vmem:[%s720 + $0x38] sm:$0xf]
      %v736 = vld [vmem:[%s720 + $0x3c] sm:$0xf]
      %v737 = vunpack.c.l.b16 %v349
      %v738 = vunpack.c.l.b16 %v359
      %v739 = vunpack.c.l.b16 %v373
      %v740 = vunpack.c.l.b16 %v383
      %v741 = vunpack.c.l.b16 %v397
      %v742 = vunpack.c.l.b16 %v407
      %v743 = vunpack.c.l.b16 %v421
      %v744 = vunpack.c.l.b16 %v431
      %v745 = vunpack.c.l.b16 %v445
      %v746 = vunpack.c.l.b16 %v455
      %v747 = vunpack.c.l.b16 %v469
      %v748 = vunpack.c.l.b16 %v479
      %v749 = vunpack.c.l.b16 %v493
      %v750 = vunpack.c.l.b16 %v503
      %v751 = vunpack.c.l.b16 %v517
      %v752 = vunpack.c.l.b16 %v527
      %v753 = vunpack.c.l.b16 %v541
      %v754 = vunpack.c.l.b16 %v551
      %v755 = vunpack.c.l.b16 %v565
      %v756 = vunpack.c.l.b16 %v575
      %v757 = vunpack.c.l.b16 %v589
      %v758 = vunpack.c.l.b16 %v599
      %v759 = vunpack.c.l.b16 %v613
      %v760 = vunpack.c.l.b16 %v623
      %v761 = vunpack.c.l.b16 %v637
      %v762 = vunpack.c.l.b16 %v647
      %v763 = vunpack.c.l.b16 %v661
      %v764 = vunpack.c.l.b16 %v671
      %v765 = vunpack.c.l.b16 %v685
      %v766 = vunpack.c.l.b16 %v695
      %v767 = vunpack.c.l.b16 %v709
      %v768 = vunpack.c.l.b16 %v719
      %v769 = vpack.c.b16 %v738, %v737
      %v770 = vpack.c.b16 %v740, %v739
      %v771 = vpack.c.b16 %v742, %v741
      %v772 = vpack.c.b16 %v744, %v743
      %v773 = vpack.c.b16 %v746, %v745
      %v774 = vpack.c.b16 %v748, %v747
      %v775 = vpack.c.b16 %v750, %v749
      %v776 = vpack.c.b16 %v752, %v751
      %v777 = vpack.c.b16 %v754, %v753
      %v778 = vpack.c.b16 %v756, %v755
      %v779 = vpack.c.b16 %v758, %v757
      %v780 = vpack.c.b16 %v760, %v759
      %v781 = vpack.c.b16 %v762, %v761
      %v782 = vpack.c.b16 %v764, %v763
      %v783 = vpack.c.b16 %v766, %v765
      %v784 = vpack.c.b16 %v768, %v767
      %v817 = vunpack.c.l.b16 %v721
      %v818 = vunpack.c.l.b16 %v722
      %v819 = vunpack.c.l.b16 %v723
      %v820 = vunpack.c.l.b16 %v724
      %v821 = vunpack.c.l.b16 %v725
      %v822 = vunpack.c.l.b16 %v726
      %v823 = vunpack.c.l.b16 %v727
      %v824 = vunpack.c.l.b16 %v728
      %v825 = vunpack.c.l.b16 %v729
      %v826 = vunpack.c.l.b16 %v730
      %v827 = vunpack.c.l.b16 %v731
      %v828 = vunpack.c.l.b16 %v732
      %v829 = vunpack.c.l.b16 %v733
      %v830 = vunpack.c.l.b16 %v734
      %v831 = vunpack.c.l.b16 %v735
      %v832 = vunpack.c.l.b16 %v736
      %v833 = vpack.c.b16 %v818, %v817
      %v834 = vpack.c.b16 %v820, %v819
      %v835 = vpack.c.b16 %v822, %v821
      %v836 = vpack.c.b16 %v824, %v823
      %v837 = vpack.c.b16 %v826, %v825
      %v838 = vpack.c.b16 %v828, %v827
      %v839 = vpack.c.b16 %v830, %v829
      %v840 = vpack.c.b16 %v832, %v831
      %849 = vmatpush.bf16.msra.mxu0 %v840
      %850 = vmatpush.bf16.msra.mxu0 %v839
      %851 = vmatpush.bf16.msra.mxu0 %v838
      %852 = vmatpush.bf16.msra.mxu0 %v837
      %853 = vmatpush.bf16.msra.mxu0 %v836
      %854 = vmatpush.bf16.msra.mxu0 %v835
      %855 = vmatpush.bf16.msra.mxu0 %v834
      %856 = vmatpush.bf16.msra.mxu0 %v833
      %857 = vmatmul.bf16.gmra.mxu0 %v769
      %v858 = vpop.f32.mrf.mxu0
      %v859 = vadd.f32 0.0, %v858
      %v860 = vpop.f32.mrf.mxu0
      %v861 = vadd.f32 0.0, %v860
      %862 = vmatmul.bf16.gmra.mxu0 %v770
      %v863 = vpop.f32.mrf.mxu0
      %v864 = vadd.f32 0.0, %v863
      %v865 = vpop.f32.mrf.mxu0
      %v866 = vadd.f32 0.0, %v865
      %867 = vmatmul.bf16.gmra.mxu0 %v771
      %v868 = vpop.f32.mrf.mxu0
      %v869 = vadd.f32 0.0, %v868
      %v870 = vpop.f32.mrf.mxu0
      %v871 = vadd.f32 0.0, %v870
      %872 = vmatmul.bf16.gmra.mxu0 %v772
      %v873 = vpop.f32.mrf.mxu0
      %v874 = vadd.f32 0.0, %v873
      %v875 = vpop.f32.mrf.mxu0
      %v876 = vadd.f32 0.0, %v875
      %877 = vmatmul.bf16.gmra.mxu0 %v773
      %v878 = vpop.f32.mrf.mxu0
      %v879 = vadd.f32 0.0, %v878
      %v880 = vpop.f32.mrf.mxu0
      %v881 = vadd.f32 0.0, %v880
      %882 = vmatmul.bf16.gmra.mxu0 %v774
      %v883 = vpop.f32.mrf.mxu0
      %v884 = vadd.f32 0.0, %v883
      %v885 = vpop.f32.mrf.mxu0
      %v886 = vadd.f32 0.0, %v885
      %887 = vmatmul.bf16.gmra.mxu0 %v775
      %v888 = vpop.f32.mrf.mxu0
      %v889 = vadd.f32 0.0, %v888
      %v890 = vpop.f32.mrf.mxu0
      %v891 = vadd.f32 0.0, %v890
      %892 = vmatmul.bf16.gmra.mxu0 %v776
      %v893 = vpop.f32.mrf.mxu0
      %v894 = vadd.f32 0.0, %v893
      %v895 = vpop.f32.mrf.mxu0
      %v896 = vadd.f32 0.0, %v895
      %897 = vmatmul.bf16.gmra.mxu0 %v777
      %v898 = vpop.f32.mrf.mxu0
      %v899 = vadd.f32 0.0, %v898
      %v900 = vpop.f32.mrf.mxu0
      %v901 = vadd.f32 0.0, %v900
      %902 = vmatmul.bf16.gmra.mxu0 %v778
      %v903 = vpop.f32.mrf.mxu0
      %v904 = vadd.f32 0.0, %v903
      %v905 = vpop.f32.mrf.mxu0
      %v906 = vadd.f32 0.0, %v905
      %907 = vmatmul.bf16.gmra.mxu0 %v779
      %v908 = vpop.f32.mrf.mxu0
      %v909 = vadd.f32 0.0, %v908
      %v910 = vpop.f32.mrf.mxu0
      %v911 = vadd.f32 0.0, %v910
      %912 = vmatmul.bf16.gmra.mxu0 %v780
      %v913 = vpop.f32.mrf.mxu0
      %v914 = vadd.f32 0.0, %v913
      %v915 = vpop.f32.mrf.mxu0
      %v916 = vadd.f32 0.0, %v915
      %917 = vmatmul.bf16.gmra.mxu0 %v781
      %v918 = vpop.f32.mrf.mxu0
      %v919 = vadd.f32 0.0, %v918
      %v920 = vpop.f32.mrf.mxu0
      %v921 = vadd.f32 0.0, %v920
      %922 = vmatmul.bf16.gmra.mxu0 %v782
      %v923 = vpop.f32.mrf.mxu0
      %v924 = vadd.f32 0.0, %v923
      %v925 = vpop.f32.mrf.mxu0
      %v926 = vadd.f32 0.0, %v925
      %927 = vmatmul.bf16.gmra.mxu0 %v783
      %v928 = vpop.f32.mrf.mxu0
      %v929 = vadd.f32 0.0, %v928
      %v930 = vpop.f32.mrf.mxu0
      %v931 = vadd.f32 0.0, %v930
      %932 = vmatmul.bf16.gmra.mxu0 %v784
      %v933 = vpop.f32.mrf.mxu0
      %v934 = vadd.f32 0.0, %v933
      %v935 = vpop.f32.mrf.mxu0
      %v936 = vadd.f32 0.0, %v935
      %937 = vdwg.mxu0
      %v970 = vunpack.c.l.b16 %v263
      %v971 = vunpack.c.l.b16 %v264
      %v972 = vunpack.c.l.b16 %v266
      %v973 = vunpack.c.l.b16 %v267
      %v974 = vunpack.c.l.b16 %v269
      %v975 = vunpack.c.l.b16 %v270
      %v976 = vunpack.c.l.b16 %v272
      %v977 = vunpack.c.l.b16 %v273
      %v978 = vunpack.c.l.b16 %v275
      %v979 = vunpack.c.l.b16 %v276
      %v980 = vunpack.c.l.b16 %v278
      %v981 = vunpack.c.l.b16 %v279
      %v982 = vunpack.c.l.b16 %v281
      %v983 = vunpack.c.l.b16 %v282
      %v984 = vunpack.c.l.b16 %v284
      %v985 = vunpack.c.l.b16 %v285
      %v986 = vunpack.c.l.b16 %v287
      %v987 = vunpack.c.l.b16 %v288
      %v988 = vunpack.c.l.b16 %v290
      %v989 = vunpack.c.l.b16 %v291
      %v990 = vunpack.c.l.b16 %v293
      %v991 = vunpack.c.l.b16 %v294
      %v992 = vunpack.c.l.b16 %v296
      %v993 = vunpack.c.l.b16 %v297
      %v994 = vunpack.c.l.b16 %v299
      %v995 = vunpack.c.l.b16 %v300
      %v996 = vunpack.c.l.b16 %v302
      %v997 = vunpack.c.l.b16 %v303
      %v998 = vunpack.c.l.b16 %v305
      %v999 = vunpack.c.l.b16 %v306
      %v1000 = vunpack.c.l.b16 %v308
      %v1001 = vunpack.c.l.b16 %v309
      %v1002 = vpack.c.b16 %v971, %v970
      %v1003 = vpack.c.b16 %v973, %v972
      %v1004 = vpack.c.b16 %v975, %v974
      %v1005 = vpack.c.b16 %v977, %v976
      %v1006 = vpack.c.b16 %v979, %v978
      %v1007 = vpack.c.b16 %v981, %v980
      %v1008 = vpack.c.b16 %v983, %v982
      %v1009 = vpack.c.b16 %v985, %v984
      %v1010 = vpack.c.b16 %v987, %v986
      %v1011 = vpack.c.b16 %v989, %v988
      %v1012 = vpack.c.b16 %v991, %v990
      %v1013 = vpack.c.b16 %v993, %v992
      %v1014 = vpack.c.b16 %v995, %v994
      %v1015 = vpack.c.b16 %v997, %v996
      %v1016 = vpack.c.b16 %v999, %v998
      %v1017 = vpack.c.b16 %v1001, %v1000
      %v1050 = vunpack.c.l.b16 %v317
      %v1051 = vunpack.c.l.b16 %v318
      %v1052 = vunpack.c.l.b16 %v319
      %v1053 = vunpack.c.l.b16 %v320
      %v1054 = vunpack.c.l.b16 %v321
      %v1055 = vunpack.c.l.b16 %v322
      %v1056 = vunpack.c.l.b16 %v323
      %v1057 = vunpack.c.l.b16 %v324
      %v1058 = vunpack.c.l.b16 %v325
      %v1059 = vunpack.c.l.b16 %v326
      %v1060 = vunpack.c.l.b16 %v327
      %v1061 = vunpack.c.l.b16 %v328
      %v1062 = vunpack.c.l.b16 %v329
      %v1063 = vunpack.c.l.b16 %v330
      %v1064 = vunpack.c.l.b16 %v331
      %v1065 = vunpack.c.l.b16 %v332
      %v1066 = vpack.c.b16 %v1051, %v1050
      %v1067 = vpack.c.b16 %v1053, %v1052
      %v1068 = vpack.c.b16 %v1055, %v1054
      %v1069 = vpack.c.b16 %v1057, %v1056
      %v1070 = vpack.c.b16 %v1059, %v1058
      %v1071 = vpack.c.b16 %v1061, %v1060
      %v1072 = vpack.c.b16 %v1063, %v1062
      %v1073 = vpack.c.b16 %v1065, %v1064
      %1082 = vmatpush.bf16.msra.mxu0 %v1073
      %1083 = vmatpush.bf16.msra.mxu0 %v1072
      %1084 = vmatpush.bf16.msra.mxu0 %v1071
      %1085 = vmatpush.bf16.msra.mxu0 %v1070
      %1086 = vmatpush.bf16.msra.mxu0 %v1069
      %1087 = vmatpush.bf16.msra.mxu0 %v1068
      %1088 = vmatpush.bf16.msra.mxu0 %v1067
      %1089 = vmatpush.bf16.msra.mxu0 %v1066
      %1090 = vmatmul.bf16.gmra.mxu0 %v1002
      %v1091 = vpop.f32.mrf.mxu0
      %v1092 = vadd.f32 %v859, %v1091
      %v1093 = vpop.f32.mrf.mxu0
      %v1094 = vadd.f32 %v861, %v1093
      %1095 = vmatmul.bf16.gmra.mxu0 %v1003
      %v1096 = vpop.f32.mrf.mxu0
      %v1097 = vadd.f32 %v864, %v1096
      %v1098 = vpop.f32.mrf.mxu0
      %v1099 = vadd.f32 %v866, %v1098
      %1100 = vmatmul.bf16.gmra.mxu0 %v1004
      %v1101 = vpop.f32.mrf.mxu0
      %v1102 = vadd.f32 %v869, %v1101
      %v1103 = vpop.f32.mrf.mxu0
      %v1104 = vadd.f32 %v871, %v1103
      %1105 = vmatmul.bf16.gmra.mxu0 %v1005
      %v1106 = vpop.f32.mrf.mxu0
      %v1107 = vadd.f32 %v874, %v1106
      %v1108 = vpop.f32.mrf.mxu0
      %v1109 = vadd.f32 %v876, %v1108
      %1110 = vmatmul.bf16.gmra.mxu0 %v1006
      %v1111 = vpop.f32.mrf.mxu0
      %v1112 = vadd.f32 %v879, %v1111
      %v1113 = vpop.f32.mrf.mxu0
      %v1114 = vadd.f32 %v881, %v1113
      %1115 = vmatmul.bf16.gmra.mxu0 %v1007
      %v1116 = vpop.f32.mrf.mxu0
      %v1117 = vadd.f32 %v884, %v1116
      %v1118 = vpop.f32.mrf.mxu0
      %v1119 = vadd.f32 %v886, %v1118
      %1120 = vmatmul.bf16.gmra.mxu0 %v1008
      %v1121 = vpop.f32.mrf.mxu0
      %v1122 = vadd.f32 %v889, %v1121
      %v1123 = vpop.f32.mrf.mxu0
      %v1124 = vadd.f32 %v891, %v1123
      %1125 = vmatmul.bf16.gmra.mxu0 %v1009
      %v1126 = vpop.f32.mrf.mxu0
      %v1127 = vadd.f32 %v894, %v1126
      %v1128 = vpop.f32.mrf.mxu0
      %v1129 = vadd.f32 %v896, %v1128
      %1130 = vmatmul.bf16.gmra.mxu0 %v1010
      %v1131 = vpop.f32.mrf.mxu0
      %v1132 = vadd.f32 %v899, %v1131
      %v1133 = vpop.f32.mrf.mxu0
      %v1134 = vadd.f32 %v901, %v1133
      %1135 = vmatmul.bf16.gmra.mxu0 %v1011
      %v1136 = vpop.f32.mrf.mxu0
      %v1137 = vadd.f32 %v904, %v1136
      %v1138 = vpop.f32.mrf.mxu0
      %v1139 = vadd.f32 %v906, %v1138
      %1140 = vmatmul.bf16.gmra.mxu0 %v1012
      %v1141 = vpop.f32.mrf.mxu0
      %v1142 = vadd.f32 %v909, %v1141
      %v1143 = vpop.f32.mrf.mxu0
      %v1144 = vadd.f32 %v911, %v1143
      %1145 = vmatmul.bf16.gmra.mxu0 %v1013
      %v1146 = vpop.f32.mrf.mxu0
      %v1147 = vadd.f32 %v914, %v1146
      %v1148 = vpop.f32.mrf.mxu0
      %v1149 = vadd.f32 %v916, %v1148
      %1150 = vmatmul.bf16.gmra.mxu0 %v1014
      %v1151 = vpop.f32.mrf.mxu0
      %v1152 = vadd.f32 %v919, %v1151
      %v1153 = vpop.f32.mrf.mxu0
      %v1154 = vadd.f32 %v921, %v1153
      %1155 = vmatmul.bf16.gmra.mxu0 %v1015
      %v1156 = vpop.f32.mrf.mxu0
      %v1157 = vadd.f32 %v924, %v1156
      %v1158 = vpop.f32.mrf.mxu0
      %v1159 = vadd.f32 %v926, %v1158
      %1160 = vmatmul.bf16.gmra.mxu0 %v1016
      %v1161 = vpop.f32.mrf.mxu0
      %v1162 = vadd.f32 %v929, %v1161
      %v1163 = vpop.f32.mrf.mxu0
      %v1164 = vadd.f32 %v931, %v1163
      %1165 = vmatmul.bf16.gmra.mxu0 %v1017
      %v1166 = vpop.f32.mrf.mxu0
      %v1167 = vadd.f32 %v934, %v1166
      %v1168 = vpop.f32.mrf.mxu0
      %v1169 = vadd.f32 %v936, %v1168
      %1170 = vdwg.mxu0
      %vm1187 = vcmask 1042432
      %vm1188 = vcmask 1046532
      %vm1189 = vmor %vm1187, %vm1188
      %v1190 = vrot.slane %v263, 5
      %v1191 = vrot.slane %v1190, 4
      %v1192 = vrot.slane %v264, 5
      %v1193 = vsel %vm1189, %v1191, %v1192
      %v1194 = vrot.slane %v1192, 4
      %v1195 = vrot.slane %v265, 5
      %v1196 = vsel %vm1189, %v1194, %v1195
      %v1197 = vrot.slane %v266, 5
      %v1198 = vrot.slane %v1197, 4
      %v1199 = vrot.slane %v267, 5
      %v1200 = vsel %vm1189, %v1198, %v1199
      %v1201 = vrot.slane %v1199, 4
      %v1202 = vrot.slane %v268, 5
      %v1203 = vsel %vm1189, %v1201, %v1202
      %v1204 = vrot.slane %v269, 5
      %v1205 = vrot.slane %v1204, 4
      %v1206 = vrot.slane %v270, 5
      %v1207 = vsel %vm1189, %v1205, %v1206
      %v1208 = vrot.slane %v1206, 4
      %v1209 = vrot.slane %v271, 5
      %v1210 = vsel %vm1189, %v1208, %v1209
      %v1211 = vrot.slane %v272, 5
      %v1212 = vrot.slane %v1211, 4
      %v1213 = vrot.slane %v273, 5
      %v1214 = vsel %vm1189, %v1212, %v1213
      %v1215 = vrot.slane %v1213, 4
      %v1216 = vrot.slane %v274, 5
      %v1217 = vsel %vm1189, %v1215, %v1216
      %v1218 = vrot.slane %v275, 5
      %v1219 = vrot.slane %v1218, 4
      %v1220 = vrot.slane %v276, 5
      %v1221 = vsel %vm1189, %v1219, %v1220
      %v1222 = vrot.slane %v1220, 4
      %v1223 = vrot.slane %v277, 5
      %v1224 = vsel %vm1189, %v1222, %v1223
      %v1225 = vrot.slane %v278, 5
      %v1226 = vrot.slane %v1225, 4
      %v1227 = vrot.slane %v279, 5
      %v1228 = vsel %vm1189, %v1226, %v1227
      %v1229 = vrot.slane %v1227, 4
      %v1230 = vrot.slane %v280, 5
      %v1231 = vsel %vm1189, %v1229, %v1230
      %v1232 = vrot.slane %v281, 5
      %v1233 = vrot.slane %v1232, 4
      %v1234 = vrot.slane %v282, 5
      %v1235 = vsel %vm1189, %v1233, %v1234
      %v1236 = vrot.slane %v1234, 4
      %v1237 = vrot.slane %v283, 5
      %v1238 = vsel %vm1189, %v1236, %v1237
      %v1239 = vrot.slane %v284, 5
      %v1240 = vrot.slane %v1239, 4
      %v1241 = vrot.slane %v285, 5
      %v1242 = vsel %vm1189, %v1240, %v1241
      %v1243 = vrot.slane %v1241, 4
      %v1244 = vrot.slane %v286, 5
      %v1245 = vsel %vm1189, %v1243, %v1244
      %v1246 = vrot.slane %v287, 5
      %v1247 = vrot.slane %v1246, 4
      %v1248 = vrot.slane %v288, 5
      %v1249 = vsel %vm1189, %v1247, %v1248
      %v1250 = vrot.slane %v1248, 4
      %v1251 = vrot.slane %v289, 5
      %v1252 = vsel %vm1189, %v1250, %v1251
      %v1253 = vrot.slane %v290, 5
      %v1254 = vrot.slane %v1253, 4
      %v1255 = vrot.slane %v291, 5
      %v1256 = vsel %vm1189, %v1254, %v1255
      %v1257 = vrot.slane %v1255, 4
      %v1258 = vrot.slane %v292, 5
      %v1259 = vsel %vm1189, %v1257, %v1258
      %v1260 = vrot.slane %v293, 5
      %v1261 = vrot.slane %v1260, 4
      %v1262 = vrot.slane %v294, 5
      %v1263 = vsel %vm1189, %v1261, %v1262
      %v1264 = vrot.slane %v1262, 4
      %v1265 = vrot.slane %v295, 5
      %v1266 = vsel %vm1189, %v1264, %v1265
      %v1267 = vrot.slane %v296, 5
      %v1268 = vrot.slane %v1267, 4
      %v1269 = vrot.slane %v297, 5
      %v1270 = vsel %vm1189, %v1268, %v1269
      %v1271 = vrot.slane %v1269, 4
      %v1272 = vrot.slane %v298, 5
      %v1273 = vsel %vm1189, %v1271, %v1272
      %v1274 = vrot.slane %v299, 5
      %v1275 = vrot.slane %v1274, 4
      %v1276 = vrot.slane %v300, 5
      %v1277 = vsel %vm1189, %v1275, %v1276
      %v1278 = vrot.slane %v1276, 4
      %v1279 = vrot.slane %v301, 5
      %v1280 = vsel %vm1189, %v1278, %v1279
      %v1281 = vrot.slane %v302, 5
      %v1282 = vrot.slane %v1281, 4
      %v1283 = vrot.slane %v303, 5
      %v1284 = vsel %vm1189, %v1282, %v1283
      %v1285 = vrot.slane %v1283, 4
      %v1286 = vrot.slane %v304, 5
      %v1287 = vsel %vm1189, %v1285, %v1286
      %v1288 = vrot.slane %v305, 5
      %v1289 = vrot.slane %v1288, 4
      %v1290 = vrot.slane %v306, 5
      %v1291 = vsel %vm1189, %v1289, %v1290
      %v1292 = vrot.slane %v1290, 4
      %v1293 = vrot.slane %v307, 5
      %v1294 = vsel %vm1189, %v1292, %v1293
      %v1295 = vrot.slane %v308, 5
      %v1296 = vrot.slane %v1295, 4
      %v1297 = vrot.slane %v309, 5
      %v1298 = vsel %vm1189, %v1296, %v1297
      %v1299 = vrot.slane %v1297, 4
      %v1300 = vrot.slane %v310, 5
      %v1301 = vsel %vm1189, %v1299, %v1300
      %s1302 = scalar_lea.vmem %s248, 128
      %v1303 = vld [vmem:[%s1302] sm:$0xf]
      %v1304 = vld [vmem:[%s1302 + $0x4] sm:$0xf]
      %v1305 = vld [vmem:[%s1302 + $0x8] sm:$0xf]
      %v1306 = vld [vmem:[%s1302 + $0xc] sm:$0xf]
      %v1307 = vld [vmem:[%s1302 + $0x10] sm:$0xf]
      %v1308 = vld [vmem:[%s1302 + $0x14] sm:$0xf]
      %v1309 = vld [vmem:[%s1302 + $0x18] sm:$0xf]
      %v1310 = vld [vmem:[%s1302 + $0x1c] sm:$0xf]
      %v1311 = vld [vmem:[%s1302 + $0x20] sm:$0xf]
      %v1312 = vld [vmem:[%s1302 + $0x24] sm:$0xf]
      %v1313 = vld [vmem:[%s1302 + $0x28] sm:$0xf]
      %v1314 = vld [vmem:[%s1302 + $0x2c] sm:$0xf]
      %v1315 = vld [vmem:[%s1302 + $0x30] sm:$0xf]
      %v1316 = vld [vmem:[%s1302 + $0x34] sm:$0xf]
      %v1317 = vld [vmem:[%s1302 + $0x38] sm:$0xf]
      %v1318 = vld [vmem:[%s1302 + $0x3c] sm:$0xf]
      %v1319 = vunpack.c.l.b16 %v1193
      %v1320 = vunpack.c.l.b16 %v1196
      %v1321 = vunpack.c.l.b16 %v1200
      %v1322 = vunpack.c.l.b16 %v1203
      %v1323 = vunpack.c.l.b16 %v1207
      %v1324 = vunpack.c.l.b16 %v1210
      %v1325 = vunpack.c.l.b16 %v1214
      %v1326 = vunpack.c.l.b16 %v1217
      %v1327 = vunpack.c.l.b16 %v1221
      %v1328 = vunpack.c.l.b16 %v1224
      %v1329 = vunpack.c.l.b16 %v1228
      %v1330 = vunpack.c.l.b16 %v1231
      %v1331 = vunpack.c.l.b16 %v1235
      %v1332 = vunpack.c.l.b16 %v1238
      %v1333 = vunpack.c.l.b16 %v1242
      %v1334 = vunpack.c.l.b16 %v1245
      %v1335 = vunpack.c.l.b16 %v1249
      %v1336 = vunpack.c.l.b16 %v1252
      %v1337 = vunpack.c.l.b16 %v1256
      %v1338 = vunpack.c.l.b16 %v1259
      %v1339 = vunpack.c.l.b16 %v1263
      %v1340 = vunpack.c.l.b16 %v1266
      %v1341 = vunpack.c.l.b16 %v1270
      %v1342 = vunpack.c.l.b16 %v1273
      %v1343 = vunpack.c.l.b16 %v1277
      %v1344 = vunpack.c.l.b16 %v1280
      %v1345 = vunpack.c.l.b16 %v1284
      %v1346 = vunpack.c.l.b16 %v1287
      %v1347 = vunpack.c.l.b16 %v1291
      %v1348 = vunpack.c.l.b16 %v1294
      %v1349 = vunpack.c.l.b16 %v1298
      %v1350 = vunpack.c.l.b16 %v1301
      %v1351 = vpack.c.b16 %v1320, %v1319
      %v1352 = vpack.c.b16 %v1322, %v1321
      %v1353 = vpack.c.b16 %v1324, %v1323
      %v1354 = vpack.c.b16 %v1326, %v1325
      %v1355 = vpack.c.b16 %v1328, %v1327
      %v1356 = vpack.c.b16 %v1330, %v1329
      %v1357 = vpack.c.b16 %v1332, %v1331
      %v1358 = vpack.c.b16 %v1334, %v1333
      %v1359 = vpack.c.b16 %v1336, %v1335
      %v1360 = vpack.c.b16 %v1338, %v1337
      %v1361 = vpack.c.b16 %v1340, %v1339
      %v1362 = vpack.c.b16 %v1342, %v1341
      %v1363 = vpack.c.b16 %v1344, %v1343
      %v1364 = vpack.c.b16 %v1346, %v1345
      %v1365 = vpack.c.b16 %v1348, %v1347
      %v1366 = vpack.c.b16 %v1350, %v1349
      %v1399 = vunpack.c.l.b16 %v1303
      %v1400 = vunpack.c.l.b16 %v1304
      %v1401 = vunpack.c.l.b16 %v1305
      %v1402 = vunpack.c.l.b16 %v1306
      %v1403 = vunpack.c.l.b16 %v1307
      %v1404 = vunpack.c.l.b16 %v1308
      %v1405 = vunpack.c.l.b16 %v1309
      %v1406 = vunpack.c.l.b16 %v1310
      %v1407 = vunpack.c.l.b16 %v1311
      %v1408 = vunpack.c.l.b16 %v1312
      %v1409 = vunpack.c.l.b16 %v1313
      %v1410 = vunpack.c.l.b16 %v1314
      %v1411 = vunpack.c.l.b16 %v1315
      %v1412 = vunpack.c.l.b16 %v1316
      %v1413 = vunpack.c.l.b16 %v1317
      %v1414 = vunpack.c.l.b16 %v1318
      %v1415 = vpack.c.b16 %v1400, %v1399
      %v1416 = vpack.c.b16 %v1402, %v1401
      %v1417 = vpack.c.b16 %v1404, %v1403
      %v1418 = vpack.c.b16 %v1406, %v1405
      %v1419 = vpack.c.b16 %v1408, %v1407
      %v1420 = vpack.c.b16 %v1410, %v1409
      %v1421 = vpack.c.b16 %v1412, %v1411
      %v1422 = vpack.c.b16 %v1414, %v1413
      %1431 = vmatpush.bf16.msra.mxu0 %v1422
      %1432 = vmatpush.bf16.msra.mxu0 %v1421
      %1433 = vmatpush.bf16.msra.mxu0 %v1420
      %1434 = vmatpush.bf16.msra.mxu0 %v1419
      %1435 = vmatpush.bf16.msra.mxu0 %v1418
      %1436 = vmatpush.bf16.msra.mxu0 %v1417
      %1437 = vmatpush.bf16.msra.mxu0 %v1416
      %1438 = vmatpush.bf16.msra.mxu0 %v1415
      %1439 = vmatmul.bf16.gmra.mxu0 %v1351
      %v1440 = vpop.f32.mrf.mxu0
      %v1441 = vadd.f32 0.0, %v1440
      %v1442 = vpop.f32.mrf.mxu0
      %v1443 = vadd.f32 0.0, %v1442
      %1444 = vmatmul.bf16.gmra.mxu0 %v1352
      %v1445 = vpop.f32.mrf.mxu0
      %v1446 = vadd.f32 0.0, %v1445
      %v1447 = vpop.f32.mrf.mxu0
      %v1448 = vadd.f32 0.0, %v1447
      %1449 = vmatmul.bf16.gmra.mxu0 %v1353
      %v1450 = vpop.f32.mrf.mxu0
      %v1451 = vadd.f32 0.0, %v1450
      %v1452 = vpop.f32.mrf.mxu0
      %v1453 = vadd.f32 0.0, %v1452
      %1454 = vmatmul.bf16.gmra.mxu0 %v1354
      %v1455 = vpop.f32.mrf.mxu0
      %v1456 = vadd.f32 0.0, %v1455
      %v1457 = vpop.f32.mrf.mxu0
      %v1458 = vadd.f32 0.0, %v1457
      %1459 = vmatmul.bf16.gmra.mxu0 %v1355
      %v1460 = vpop.f32.mrf.mxu0
      %v1461 = vadd.f32 0.0, %v1460
      %v1462 = vpop.f32.mrf.mxu0
      %v1463 = vadd.f32 0.0, %v1462
      %1464 = vmatmul.bf16.gmra.mxu0 %v1356
      %v1465 = vpop.f32.mrf.mxu0
      %v1466 = vadd.f32 0.0, %v1465
      %v1467 = vpop.f32.mrf.mxu0
      %v1468 = vadd.f32 0.0, %v1467
      %1469 = vmatmul.bf16.gmra.mxu0 %v1357
      %v1470 = vpop.f32.mrf.mxu0
      %v1471 = vadd.f32 0.0, %v1470
      %v1472 = vpop.f32.mrf.mxu0
      %v1473 = vadd.f32 0.0, %v1472
      %1474 = vmatmul.bf16.gmra.mxu0 %v1358
      %v1475 = vpop.f32.mrf.mxu0
      %v1476 = vadd.f32 0.0, %v1475
      %v1477 = vpop.f32.mrf.mxu0
      %v1478 = vadd.f32 0.0, %v1477
      %1479 = vmatmul.bf16.gmra.mxu0 %v1359
      %v1480 = vpop.f32.mrf.mxu0
      %v1481 = vadd.f32 0.0, %v1480
      %v1482 = vpop.f32.mrf.mxu0
      %v1483 = vadd.f32 0.0, %v1482
      %1484 = vmatmul.bf16.gmra.mxu0 %v1360
      %v1485 = vpop.f32.mrf.mxu0
      %v1486 = vadd.f32 0.0, %v1485
      %v1487 = vpop.f32.mrf.mxu0
      %v1488 = vadd.f32 0.0, %v1487
      %1489 = vmatmul.bf16.gmra.mxu0 %v1361
      %v1490 = vpop.f32.mrf.mxu0
      %v1491 = vadd.f32 0.0, %v1490
      %v1492 = vpop.f32.mrf.mxu0
      %v1493 = vadd.f32 0.0, %v1492
      %1494 = vmatmul.bf16.gmra.mxu0 %v1362
      %v1495 = vpop.f32.mrf.mxu0
      %v1496 = vadd.f32 0.0, %v1495
      %v1497 = vpop.f32.mrf.mxu0
      %v1498 = vadd.f32 0.0, %v1497
      %1499 = vmatmul.bf16.gmra.mxu0 %v1363
      %v1500 = vpop.f32.mrf.mxu0
      %v1501 = vadd.f32 0.0, %v1500
      %v1502 = vpop.f32.mrf.mxu0
      %v1503 = vadd.f32 0.0, %v1502
      %1504 = vmatmul.bf16.gmra.mxu0 %v1364
      %v1505 = vpop.f32.mrf.mxu0
      %v1506 = vadd.f32 0.0, %v1505
      %v1507 = vpop.f32.mrf.mxu0
      %v1508 = vadd.f32 0.0, %v1507
      %1509 = vmatmul.bf16.gmra.mxu0 %v1365
      %v1510 = vpop.f32.mrf.mxu0
      %v1511 = vadd.f32 0.0, %v1510
      %v1512 = vpop.f32.mrf.mxu0
      %v1513 = vadd.f32 0.0, %v1512
      %1514 = vmatmul.bf16.gmra.mxu0 %v1366
      %v1515 = vpop.f32.mrf.mxu0
      %v1516 = vadd.f32 0.0, %v1515
      %v1517 = vpop.f32.mrf.mxu0
      %v1518 = vadd.f32 0.0, %v1517
      %1519 = vdwg.mxu0
      %v1520 = vadd.f32 %v1092, %v1441
      %v1521 = vadd.f32 %v1094, %v1443
      %v1522 = vadd.f32 %v1097, %v1446
      %v1523 = vadd.f32 %v1099, %v1448
      %v1524 = vadd.f32 %v1102, %v1451
      %v1525 = vadd.f32 %v1104, %v1453
      %v1526 = vadd.f32 %v1107, %v1456
      %v1527 = vadd.f32 %v1109, %v1458
      %v1528 = vadd.f32 %v1112, %v1461
      %v1529 = vadd.f32 %v1114, %v1463
      %v1530 = vadd.f32 %v1117, %v1466
      %v1531 = vadd.f32 %v1119, %v1468
      %v1532 = vadd.f32 %v1122, %v1471
      %v1533 = vadd.f32 %v1124, %v1473
      %v1534 = vadd.f32 %v1127, %v1476
      %v1535 = vadd.f32 %v1129, %v1478
      %v1536 = vadd.f32 %v1132, %v1481
      %v1537 = vadd.f32 %v1134, %v1483
      %v1538 = vadd.f32 %v1137, %v1486
      %v1539 = vadd.f32 %v1139, %v1488
      %v1540 = vadd.f32 %v1142, %v1491
      %v1541 = vadd.f32 %v1144, %v1493
      %v1542 = vadd.f32 %v1147, %v1496
      %v1543 = vadd.f32 %v1149, %v1498
      %v1544 = vadd.f32 %v1152, %v1501
      %v1545 = vadd.f32 %v1154, %v1503
      %v1546 = vadd.f32 %v1157, %v1506
      %v1547 = vadd.f32 %v1159, %v1508
      %v1548 = vadd.f32 %v1162, %v1511
      %v1549 = vadd.f32 %v1164, %v1513
      %v1550 = vadd.f32 %v1167, %v1516
      %v1551 = vadd.f32 %v1169, %v1518
      %s1552 = scalar_lea.vmem %s248, 192
      %v1553 = vld [vmem:[%s1552] sm:$0xf]
      %v1554 = vld [vmem:[%s1552 + $0x4] sm:$0xf]
      %v1555 = vld [vmem:[%s1552 + $0x8] sm:$0xf]
      %v1556 = vld [vmem:[%s1552 + $0xc] sm:$0xf]
      %v1557 = vld [vmem:[%s1552 + $0x10] sm:$0xf]
      %v1558 = vld [vmem:[%s1552 + $0x14] sm:$0xf]
      %v1559 = vld [vmem:[%s1552 + $0x18] sm:$0xf]
      %v1560 = vld [vmem:[%s1552 + $0x1c] sm:$0xf]
      %v1561 = vld [vmem:[%s1552 + $0x20] sm:$0xf]
      %v1562 = vld [vmem:[%s1552 + $0x24] sm:$0xf]
      %v1563 = vld [vmem:[%s1552 + $0x28] sm:$0xf]
      %v1564 = vld [vmem:[%s1552 + $0x2c] sm:$0xf]
      %v1565 = vld [vmem:[%s1552 + $0x30] sm:$0xf]
      %v1566 = vld [vmem:[%s1552 + $0x34] sm:$0xf]
      %v1567 = vld [vmem:[%s1552 + $0x38] sm:$0xf]
      %v1568 = vld [vmem:[%s1552 + $0x3c] sm:$0xf]
      %v1571 = vunpack.c.l.b16 %v311
      %v1572 = vunpack.c.l.b16 %v312
      %v1573 = vpack.c.b16 %v1572, %v1571
      %v1591 = vunpack.c.l.b16 %v1553
      %v1592 = vunpack.c.l.b16 %v1554
      %v1593 = vunpack.c.l.b16 %v1555
      %v1594 = vunpack.c.l.b16 %v1556
      %v1595 = vunpack.c.l.b16 %v1557
      %v1596 = vunpack.c.l.b16 %v1558
      %v1597 = vunpack.c.l.b16 %v1559
      %v1598 = vunpack.c.l.b16 %v1560
      %v1599 = vunpack.c.l.b16 %v1561
      %v1600 = vunpack.c.l.b16 %v1562
      %v1601 = vunpack.c.l.b16 %v1563
      %v1602 = vunpack.c.l.b16 %v1564
      %v1603 = vunpack.c.l.b16 %v1565
      %v1604 = vunpack.c.l.b16 %v1566
      %v1605 = vunpack.c.l.b16 %v1567
      %v1606 = vunpack.c.l.b16 %v1568
      %v1607 = vpack.c.b16 %v1592, %v1591
      %v1608 = vpack.c.b16 %v1594, %v1593
      %v1609 = vpack.c.b16 %v1596, %v1595
      %v1610 = vpack.c.b16 %v1598, %v1597
      %v1611 = vpack.c.b16 %v1600, %v1599
      %v1612 = vpack.c.b16 %v1602, %v1601
      %v1613 = vpack.c.b16 %v1604, %v1603
      %v1614 = vpack.c.b16 %v1606, %v1605
      %1623 = vmatpush.bf16.msra.mxu0 %v1614
      %1624 = vmatpush.bf16.msra.mxu0 %v1613
      %1625 = vmatpush.bf16.msra.mxu0 %v1612
      %1626 = vmatpush.bf16.msra.mxu0 %v1611
      %1627 = vmatpush.bf16.msra.mxu0 %v1610
      %1628 = vmatpush.bf16.msra.mxu0 %v1609
      %1629 = vmatpush.bf16.msra.mxu0 %v1608
      %1630 = vmatpush.bf16.msra.mxu0 %v1607
      %1631 = vmatmul.bf16.gmra.mxu0 %v1003
      %v1632 = vpop.f32.mrf.mxu0
      %v1633 = vadd.f32 0.0, %v1632
      %v1634 = vpop.f32.mrf.mxu0
      %v1635 = vadd.f32 0.0, %v1634
      %1636 = vmatmul.bf16.gmra.mxu0 %v1004
      %v1637 = vpop.f32.mrf.mxu0
      %v1638 = vadd.f32 0.0, %v1637
      %v1639 = vpop.f32.mrf.mxu0
      %v1640 = vadd.f32 0.0, %v1639
      %1641 = vmatmul.bf16.gmra.mxu0 %v1005
      %v1642 = vpop.f32.mrf.mxu0
      %v1643 = vadd.f32 0.0, %v1642
      %v1644 = vpop.f32.mrf.mxu0
      %v1645 = vadd.f32 0.0, %v1644
      %1646 = vmatmul.bf16.gmra.mxu0 %v1006
      %v1647 = vpop.f32.mrf.mxu0
      %v1648 = vadd.f32 0.0, %v1647
      %v1649 = vpop.f32.mrf.mxu0
      %v1650 = vadd.f32 0.0, %v1649
      %1651 = vmatmul.bf16.gmra.mxu0 %v1007
      %v1652 = vpop.f32.mrf.mxu0
      %v1653 = vadd.f32 0.0, %v1652
      %v1654 = vpop.f32.mrf.mxu0
      %v1655 = vadd.f32 0.0, %v1654
      %1656 = vmatmul.bf16.gmra.mxu0 %v1008
      %v1657 = vpop.f32.mrf.mxu0
      %v1658 = vadd.f32 0.0, %v1657
      %v1659 = vpop.f32.mrf.mxu0
      %v1660 = vadd.f32 0.0, %v1659
      %1661 = vmatmul.bf16.gmra.mxu0 %v1009
      %v1662 = vpop.f32.mrf.mxu0
      %v1663 = vadd.f32 0.0, %v1662
      %v1664 = vpop.f32.mrf.mxu0
      %v1665 = vadd.f32 0.0, %v1664
      %1666 = vmatmul.bf16.gmra.mxu0 %v1010
      %v1667 = vpop.f32.mrf.mxu0
      %v1668 = vadd.f32 0.0, %v1667
      %v1669 = vpop.f32.mrf.mxu0
      %v1670 = vadd.f32 0.0, %v1669
      %1671 = vmatmul.bf16.gmra.mxu0 %v1011
      %v1672 = vpop.f32.mrf.mxu0
      %v1673 = vadd.f32 0.0, %v1672
      %v1674 = vpop.f32.mrf.mxu0
      %v1675 = vadd.f32 0.0, %v1674
      %1676 = vmatmul.bf16.gmra.mxu0 %v1012
      %v1677 = vpop.f32.mrf.mxu0
      %v1678 = vadd.f32 0.0, %v1677
      %v1679 = vpop.f32.mrf.mxu0
      %v1680 = vadd.f32 0.0, %v1679
      %1681 = vmatmul.bf16.gmra.mxu0 %v1013
      %v1682 = vpop.f32.mrf.mxu0
      %v1683 = vadd.f32 0.0, %v1682
      %v1684 = vpop.f32.mrf.mxu0
      %v1685 = vadd.f32 0.0, %v1684
      %1686 = vmatmul.bf16.gmra.mxu0 %v1014
      %v1687 = vpop.f32.mrf.mxu0
      %v1688 = vadd.f32 0.0, %v1687
      %v1689 = vpop.f32.mrf.mxu0
      %v1690 = vadd.f32 0.0, %v1689
      %1691 = vmatmul.bf16.gmra.mxu0 %v1015
      %v1692 = vpop.f32.mrf.mxu0
      %v1693 = vadd.f32 0.0, %v1692
      %v1694 = vpop.f32.mrf.mxu0
      %v1695 = vadd.f32 0.0, %v1694
      %1696 = vmatmul.bf16.gmra.mxu0 %v1016
      %v1697 = vpop.f32.mrf.mxu0
      %v1698 = vadd.f32 0.0, %v1697
      %v1699 = vpop.f32.mrf.mxu0
      %v1700 = vadd.f32 0.0, %v1699
      %1701 = vmatmul.bf16.gmra.mxu0 %v1017
      %v1702 = vpop.f32.mrf.mxu0
      %v1703 = vadd.f32 0.0, %v1702
      %v1704 = vpop.f32.mrf.mxu0
      %v1705 = vadd.f32 0.0, %v1704
      %1706 = vmatmul.bf16.gmra.mxu0 %v1573
      %v1707 = vpop.f32.mrf.mxu0
      %v1708 = vadd.f32 0.0, %v1707
      %v1709 = vpop.f32.mrf.mxu0
      %v1710 = vadd.f32 0.0, %v1709
      %1711 = vdwg.mxu0
      %v1712 = vadd.f32 %v1520, %v1633
      %v1713 = vadd.f32 %v1521, %v1635
      %v1714 = vadd.f32 %v1522, %v1638
      %v1715 = vadd.f32 %v1523, %v1640
      %v1716 = vadd.f32 %v1524, %v1643
      %v1717 = vadd.f32 %v1525, %v1645
      %v1718 = vadd.f32 %v1526, %v1648
      %v1719 = vadd.f32 %v1527, %v1650
      %v1720 = vadd.f32 %v1528, %v1653
      %v1721 = vadd.f32 %v1529, %v1655
      %v1722 = vadd.f32 %v1530, %v1658
      %v1723 = vadd.f32 %v1531, %v1660
      %v1724 = vadd.f32 %v1532, %v1663
      %v1725 = vadd.f32 %v1533, %v1665
      %v1726 = vadd.f32 %v1534, %v1668
      %v1727 = vadd.f32 %v1535, %v1670
      %v1728 = vadd.f32 %v1536, %v1673
      %v1729 = vadd.f32 %v1537, %v1675
      %v1730 = vadd.f32 %v1538, %v1678
      %v1731 = vadd.f32 %v1539, %v1680
      %v1732 = vadd.f32 %v1540, %v1683
      %v1733 = vadd.f32 %v1541, %v1685
      %v1734 = vadd.f32 %v1542, %v1688
      %v1735 = vadd.f32 %v1543, %v1690
      %v1736 = vadd.f32 %v1544, %v1693
      %v1737 = vadd.f32 %v1545, %v1695
      %v1738 = vadd.f32 %v1546, %v1698
      %v1739 = vadd.f32 %v1547, %v1700
      %v1740 = vadd.f32 %v1548, %v1703
      %v1741 = vadd.f32 %v1549, %v1705
      %v1742 = vadd.f32 %v1550, %v1708
      %v1743 = vadd.f32 %v1551, %v1710
      %v1745 = vshrl.u32 %v311, 16
      %v1747 = vrot.slane %v1745, 4
      %v1748 = vshll.u32 %v311, 16
      %v1750 = vrot.slane %v1748, 5
      %v1751 = vor.u32 %v1747, %v1750
      %v1752 = vrot.slane %v1751, 4
      %v1754 = vshll.u32 %v312, 16
      %v1756 = vrot.slane %v1754, 5
      %v1757 = vsel %vm335, %v1752, %v1756
      %v1758 = vshrl.u32 %v312, 16
      %v1760 = vrot.slane %v1758, 4
      %v1761 = vor.u32 %v1760, %v1756
      %v1762 = vrot.slane %v1761, 4
      %v1764 = vshll.u32 %v313, 16
      %v1766 = vrot.slane %v1764, 5
      %v1767 = vsel %vm335, %v1762, %v1766
      %s1768 = scalar_lea.vmem %s248, 256
      %v1769 = vld [vmem:[%s1768] sm:$0xf]
      %v1770 = vld [vmem:[%s1768 + $0x4] sm:$0xf]
      %v1771 = vld [vmem:[%s1768 + $0x8] sm:$0xf]
      %v1772 = vld [vmem:[%s1768 + $0xc] sm:$0xf]
      %v1773 = vld [vmem:[%s1768 + $0x10] sm:$0xf]
      %v1774 = vld [vmem:[%s1768 + $0x14] sm:$0xf]
      %v1775 = vld [vmem:[%s1768 + $0x18] sm:$0xf]
      %v1776 = vld [vmem:[%s1768 + $0x1c] sm:$0xf]
      %v1777 = vld [vmem:[%s1768 + $0x20] sm:$0xf]
      %v1778 = vld [vmem:[%s1768 + $0x24] sm:$0xf]
      %v1779 = vld [vmem:[%s1768 + $0x28] sm:$0xf]
      %v1780 = vld [vmem:[%s1768 + $0x2c] sm:$0xf]
      %v1781 = vld [vmem:[%s1768 + $0x30] sm:$0xf]
      %v1782 = vld [vmem:[%s1768 + $0x34] sm:$0xf]
      %v1783 = vld [vmem:[%s1768 + $0x38] sm:$0xf]
      %v1784 = vld [vmem:[%s1768 + $0x3c] sm:$0xf]
      %v1785 = vunpack.c.l.b16 %v1757
      %v1786 = vunpack.c.l.b16 %v1767
      %v1787 = vpack.c.b16 %v1786, %v1785
      %v1805 = vunpack.c.l.b16 %v1769
      %v1806 = vunpack.c.l.b16 %v1770
      %v1807 = vunpack.c.l.b16 %v1771
      %v1808 = vunpack.c.l.b16 %v1772
      %v1809 = vunpack.c.l.b16 %v1773
      %v1810 = vunpack.c.l.b16 %v1774
      %v1811 = vunpack.c.l.b16 %v1775
      %v1812 = vunpack.c.l.b16 %v1776
      %v1813 = vunpack.c.l.b16 %v1777
      %v1814 = vunpack.c.l.b16 %v1778
      %v1815 = vunpack.c.l.b16 %v1779
      %v1816 = vunpack.c.l.b16 %v1780
      %v1817 = vunpack.c.l.b16 %v1781
      %v1818 = vunpack.c.l.b16 %v1782
      %v1819 = vunpack.c.l.b16 %v1783
      %v1820 = vunpack.c.l.b16 %v1784
      %v1821 = vpack.c.b16 %v1806, %v1805
      %v1822 = vpack.c.b16 %v1808, %v1807
      %v1823 = vpack.c.b16 %v1810, %v1809
      %v1824 = vpack.c.b16 %v1812, %v1811
      %v1825 = vpack.c.b16 %v1814, %v1813
      %v1826 = vpack.c.b16 %v1816, %v1815
      %v1827 = vpack.c.b16 %v1818, %v1817
      %v1828 = vpack.c.b16 %v1820, %v1819
      %1837 = vmatpush.bf16.msra.mxu0 %v1828
      %1838 = vmatpush.bf16.msra.mxu0 %v1827
      %1839 = vmatpush.bf16.msra.mxu0 %v1826
      %1840 = vmatpush.bf16.msra.mxu0 %v1825
      %1841 = vmatpush.bf16.msra.mxu0 %v1824
      %1842 = vmatpush.bf16.msra.mxu0 %v1823
      %1843 = vmatpush.bf16.msra.mxu0 %v1822
      %1844 = vmatpush.bf16.msra.mxu0 %v1821
      %1845 = vmatmul.bf16.gmra.mxu0 %v770
      %v1846 = vpop.f32.mrf.mxu0
      %v1847 = vadd.f32 0.0, %v1846
      %v1848 = vpop.f32.mrf.mxu0
      %v1849 = vadd.f32 0.0, %v1848
      %1850 = vmatmul.bf16.gmra.mxu0 %v771
      %v1851 = vpop.f32.mrf.mxu0
      %v1852 = vadd.f32 0.0, %v1851
      %v1853 = vpop.f32.mrf.mxu0
      %v1854 = vadd.f32 0.0, %v1853
      %1855 = vmatmul.bf16.gmra.mxu0 %v772
      %v1856 = vpop.f32.mrf.mxu0
      %v1857 = vadd.f32 0.0, %v1856
      %v1858 = vpop.f32.mrf.mxu0
      %v1859 = vadd.f32 0.0, %v1858
      %1860 = vmatmul.bf16.gmra.mxu0 %v773
      %v1861 = vpop.f32.mrf.mxu0
      %v1862 = vadd.f32 0.0, %v1861
      %v1863 = vpop.f32.mrf.mxu0
      %v1864 = vadd.f32 0.0, %v1863
      %1865 = vmatmul.bf16.gmra.mxu0 %v774
      %v1866 = vpop.f32.mrf.mxu0
      %v1867 = vadd.f32 0.0, %v1866
      %v1868 = vpop.f32.mrf.mxu0
      %v1869 = vadd.f32 0.0, %v1868
      %1870 = vmatmul.bf16.gmra.mxu0 %v775
      %v1871 = vpop.f32.mrf.mxu0
      %v1872 = vadd.f32 0.0, %v1871
      %v1873 = vpop.f32.mrf.mxu0
      %v1874 = vadd.f32 0.0, %v1873
      %1875 = vmatmul.bf16.gmra.mxu0 %v776
      %v1876 = vpop.f32.mrf.mxu0
      %v1877 = vadd.f32 0.0, %v1876
      %v1878 = vpop.f32.mrf.mxu0
      %v1879 = vadd.f32 0.0, %v1878
      %1880 = vmatmul.bf16.gmra.mxu0 %v777
      %v1881 = vpop.f32.mrf.mxu0
      %v1882 = vadd.f32 0.0, %v1881
      %v1883 = vpop.f32.mrf.mxu0
      %v1884 = vadd.f32 0.0, %v1883
      %1885 = vmatmul.bf16.gmra.mxu0 %v778
      %v1886 = vpop.f32.mrf.mxu0
      %v1887 = vadd.f32 0.0, %v1886
      %v1888 = vpop.f32.mrf.mxu0
      %v1889 = vadd.f32 0.0, %v1888
      %1890 = vmatmul.bf16.gmra.mxu0 %v779
      %v1891 = vpop.f32.mrf.mxu0
      %v1892 = vadd.f32 0.0, %v1891
      %v1893 = vpop.f32.mrf.mxu0
      %v1894 = vadd.f32 0.0, %v1893
      %1895 = vmatmul.bf16.gmra.mxu0 %v780
      %v1896 = vpop.f32.mrf.mxu0
      %v1897 = vadd.f32 0.0, %v1896
      %v1898 = vpop.f32.mrf.mxu0
      %v1899 = vadd.f32 0.0, %v1898
      %1900 = vmatmul.bf16.gmra.mxu0 %v781
      %v1901 = vpop.f32.mrf.mxu0
      %v1902 = vadd.f32 0.0, %v1901
      %v1903 = vpop.f32.mrf.mxu0
      %v1904 = vadd.f32 0.0, %v1903
      %1905 = vmatmul.bf16.gmra.mxu0 %v782
      %v1906 = vpop.f32.mrf.mxu0
      %v1907 = vadd.f32 0.0, %v1906
      %v1908 = vpop.f32.mrf.mxu0
      %v1909 = vadd.f32 0.0, %v1908
      %1910 = vmatmul.bf16.gmra.mxu0 %v783
      %v1911 = vpop.f32.mrf.mxu0
      %v1912 = vadd.f32 0.0, %v1911
      %v1913 = vpop.f32.mrf.mxu0
      %v1914 = vadd.f32 0.0, %v1913
      %1915 = vmatmul.bf16.gmra.mxu0 %v784
      %v1916 = vpop.f32.mrf.mxu0
      %v1917 = vadd.f32 0.0, %v1916
      %v1918 = vpop.f32.mrf.mxu0
      %v1919 = vadd.f32 0.0, %v1918
      %1920 = vmatmul.bf16.gmra.mxu0 %v1787
      %v1921 = vpop.f32.mrf.mxu0
      %v1922 = vadd.f32 0.0, %v1921
      %v1923 = vpop.f32.mrf.mxu0
      %v1924 = vadd.f32 0.0, %v1923
      %1925 = vdwg.mxu0
      %v1926 = vadd.f32 %v1712, %v1847
      %v1927 = vadd.f32 %v1713, %v1849
      %v1928 = vadd.f32 %v1714, %v1852
      %v1929 = vadd.f32 %v1715, %v1854
      %v1930 = vadd.f32 %v1716, %v1857
      %v1931 = vadd.f32 %v1717, %v1859
      %v1932 = vadd.f32 %v1718, %v1862
      %v1933 = vadd.f32 %v1719, %v1864
      %v1934 = vadd.f32 %v1720, %v1867
      %v1935 = vadd.f32 %v1721, %v1869
      %v1936 = vadd.f32 %v1722, %v1872
      %v1937 = vadd.f32 %v1723, %v1874
      %v1938 = vadd.f32 %v1724, %v1877
      %v1939 = vadd.f32 %v1725, %v1879
      %v1940 = vadd.f32 %v1726, %v1882
      %v1941 = vadd.f32 %v1727, %v1884
      %v1942 = vadd.f32 %v1728, %v1887
      %v1943 = vadd.f32 %v1729, %v1889
      %v1944 = vadd.f32 %v1730, %v1892
      %v1945 = vadd.f32 %v1731, %v1894
      %v1946 = vadd.f32 %v1732, %v1897
      %v1947 = vadd.f32 %v1733, %v1899
      %v1948 = vadd.f32 %v1734, %v1902
      %v1949 = vadd.f32 %v1735, %v1904
      %v1950 = vadd.f32 %v1736, %v1907
      %v1951 = vadd.f32 %v1737, %v1909
      %v1952 = vadd.f32 %v1738, %v1912
      %v1953 = vadd.f32 %v1739, %v1914
      %v1954 = vadd.f32 %v1740, %v1917
      %v1955 = vadd.f32 %v1741, %v1919
      %v1956 = vadd.f32 %v1742, %v1922
      %v1957 = vadd.f32 %v1743, %v1924
      %v1959 = vrot.slane %v311, 5
      %v1960 = vrot.slane %v1959, 4
      %v1961 = vrot.slane %v312, 5
      %v1962 = vsel %vm1189, %v1960, %v1961
      %v1963 = vrot.slane %v1961, 4
      %v1964 = vrot.slane %v313, 5
      %v1965 = vsel %vm1189, %v1963, %v1964
      %s1966 = scalar_lea.vmem %s248, 320
      %v1967 = vld [vmem:[%s1966] sm:$0xf]
      %v1968 = vld [vmem:[%s1966 + $0x4] sm:$0xf]
      %v1969 = vld [vmem:[%s1966 + $0x8] sm:$0xf]
      %v1970 = vld [vmem:[%s1966 + $0xc] sm:$0xf]
      %v1971 = vld [vmem:[%s1966 + $0x10] sm:$0xf]
      %v1972 = vld [vmem:[%s1966 + $0x14] sm:$0xf]
      %v1973 = vld [vmem:[%s1966 + $0x18] sm:$0xf]
      %v1974 = vld [vmem:[%s1966 + $0x1c] sm:$0xf]
      %v1975 = vld [vmem:[%s1966 + $0x20] sm:$0xf]
      %v1976 = vld [vmem:[%s1966 + $0x24] sm:$0xf]
      %v1977 = vld [vmem:[%s1966 + $0x28] sm:$0xf]
      %v1978 = vld [vmem:[%s1966 + $0x2c] sm:$0xf]
      %v1979 = vld [vmem:[%s1966 + $0x30] sm:$0xf]
      %v1980 = vld [vmem:[%s1966 + $0x34] sm:$0xf]
      %v1981 = vld [vmem:[%s1966 + $0x38] sm:$0xf]
      %v1982 = vld [vmem:[%s1966 + $0x3c] sm:$0xf]
      %v1983 = vunpack.c.l.b16 %v1962
      %v1984 = vunpack.c.l.b16 %v1965
      %v1985 = vpack.c.b16 %v1984, %v1983
      %v2003 = vunpack.c.l.b16 %v1967
      %v2004 = vunpack.c.l.b16 %v1968
      %v2005 = vunpack.c.l.b16 %v1969
      %v2006 = vunpack.c.l.b16 %v1970
      %v2007 = vunpack.c.l.b16 %v1971
      %v2008 = vunpack.c.l.b16 %v1972
      %v2009 = vunpack.c.l.b16 %v1973
      %v2010 = vunpack.c.l.b16 %v1974
      %v2011 = vunpack.c.l.b16 %v1975
      %v2012 = vunpack.c.l.b16 %v1976
      %v2013 = vunpack.c.l.b16 %v1977
      %v2014 = vunpack.c.l.b16 %v1978
      %v2015 = vunpack.c.l.b16 %v1979
      %v2016 = vunpack.c.l.b16 %v1980
      %v2017 = vunpack.c.l.b16 %v1981
      %v2018 = vunpack.c.l.b16 %v1982
      %v2019 = vpack.c.b16 %v2004, %v2003
      %v2020 = vpack.c.b16 %v2006, %v2005
      %v2021 = vpack.c.b16 %v2008, %v2007
      %v2022 = vpack.c.b16 %v2010, %v2009
      %v2023 = vpack.c.b16 %v2012, %v2011
      %v2024 = vpack.c.b16 %v2014, %v2013
      %v2025 = vpack.c.b16 %v2016, %v2015
      %v2026 = vpack.c.b16 %v2018, %v2017
      %2035 = vmatpush.bf16.msra.mxu0 %v2026
      %2036 = vmatpush.bf16.msra.mxu0 %v2025
      %2037 = vmatpush.bf16.msra.mxu0 %v2024
      %2038 = vmatpush.bf16.msra.mxu0 %v2023
      %2039 = vmatpush.bf16.msra.mxu0 %v2022
      %2040 = vmatpush.bf16.msra.mxu0 %v2021
      %2041 = vmatpush.bf16.msra.mxu0 %v2020
      %2042 = vmatpush.bf16.msra.mxu0 %v2019
      %2043 = vmatmul.bf16.gmra.mxu0 %v1352
      %v2044 = vpop.f32.mrf.mxu0
      %v2045 = vadd.f32 0.0, %v2044
      %v2046 = vpop.f32.mrf.mxu0
      %v2047 = vadd.f32 0.0, %v2046
      %2048 = vmatmul.bf16.gmra.mxu0 %v1353
      %v2049 = vpop.f32.mrf.mxu0
      %v2050 = vadd.f32 0.0, %v2049
      %v2051 = vpop.f32.mrf.mxu0
      %v2052 = vadd.f32 0.0, %v2051
      %2053 = vmatmul.bf16.gmra.mxu0 %v1354
      %v2054 = vpop.f32.mrf.mxu0
      %v2055 = vadd.f32 0.0, %v2054
      %v2056 = vpop.f32.mrf.mxu0
      %v2057 = vadd.f32 0.0, %v2056
      %2058 = vmatmul.bf16.gmra.mxu0 %v1355
      %v2059 = vpop.f32.mrf.mxu0
      %v2060 = vadd.f32 0.0, %v2059
      %v2061 = vpop.f32.mrf.mxu0
      %v2062 = vadd.f32 0.0, %v2061
      %2063 = vmatmul.bf16.gmra.mxu0 %v1356
      %v2064 = vpop.f32.mrf.mxu0
      %v2065 = vadd.f32 0.0, %v2064
      %v2066 = vpop.f32.mrf.mxu0
      %v2067 = vadd.f32 0.0, %v2066
      %2068 = vmatmul.bf16.gmra.mxu0 %v1357
      %v2069 = vpop.f32.mrf.mxu0
      %v2070 = vadd.f32 0.0, %v2069
      %v2071 = vpop.f32.mrf.mxu0
      %v2072 = vadd.f32 0.0, %v2071
      %2073 = vmatmul.bf16.gmra.mxu0 %v1358
      %v2074 = vpop.f32.mrf.mxu0
      %v2075 = vadd.f32 0.0, %v2074
      %v2076 = vpop.f32.mrf.mxu0
      %v2077 = vadd.f32 0.0, %v2076
      %2078 = vmatmul.bf16.gmra.mxu0 %v1359
      %v2079 = vpop.f32.mrf.mxu0
      %v2080 = vadd.f32 0.0, %v2079
      %v2081 = vpop.f32.mrf.mxu0
      %v2082 = vadd.f32 0.0, %v2081
      %2083 = vmatmul.bf16.gmra.mxu0 %v1360
      %v2084 = vpop.f32.mrf.mxu0
      %v2085 = vadd.f32 0.0, %v2084
      %v2086 = vpop.f32.mrf.mxu0
      %v2087 = vadd.f32 0.0, %v2086
      %2088 = vmatmul.bf16.gmra.mxu0 %v1361
      %v2089 = vpop.f32.mrf.mxu0
      %v2090 = vadd.f32 0.0, %v2089
      %v2091 = vpop.f32.mrf.mxu0
      %v2092 = vadd.f32 0.0, %v2091
      %2093 = vmatmul.bf16.gmra.mxu0 %v1362
      %v2094 = vpop.f32.mrf.mxu0
      %v2095 = vadd.f32 0.0, %v2094
      %v2096 = vpop.f32.mrf.mxu0
      %v2097 = vadd.f32 0.0, %v2096
      %2098 = vmatmul.bf16.gmra.mxu0 %v1363
      %v2099 = vpop.f32.mrf.mxu0
      %v2100 = vadd.f32 0.0, %v2099
      %v2101 = vpop.f32.mrf.mxu0
      %v2102 = vadd.f32 0.0, %v2101
      %2103 = vmatmul.bf16.gmra.mxu0 %v1364
      %v2104 = vpop.f32.mrf.mxu0
      %v2105 = vadd.f32 0.0, %v2104
      %v2106 = vpop.f32.mrf.mxu0
      %v2107 = vadd.f32 0.0, %v2106
      %2108 = vmatmul.bf16.gmra.mxu0 %v1365
      %v2109 = vpop.f32.mrf.mxu0
      %v2110 = vadd.f32 0.0, %v2109
      %v2111 = vpop.f32.mrf.mxu0
      %v2112 = vadd.f32 0.0, %v2111
      %2113 = vmatmul.bf16.gmra.mxu0 %v1366
      %v2114 = vpop.f32.mrf.mxu0
      %v2115 = vadd.f32 0.0, %v2114
      %v2116 = vpop.f32.mrf.mxu0
      %v2117 = vadd.f32 0.0, %v2116
      %2118 = vmatmul.bf16.gmra.mxu0 %v1985
      %v2119 = vpop.f32.mrf.mxu0
      %v2120 = vadd.f32 0.0, %v2119
      %v2121 = vpop.f32.mrf.mxu0
      %v2122 = vadd.f32 0.0, %v2121
      %2123 = vdwg.mxu0
      %v2124 = vadd.f32 %v1926, %v2045
      %v2125 = vadd.f32 %v1927, %v2047
      %v2126 = vadd.f32 %v1928, %v2050
      %v2127 = vadd.f32 %v1929, %v2052
      %v2128 = vadd.f32 %v1930, %v2055
      %v2129 = vadd.f32 %v1931, %v2057
      %v2130 = vadd.f32 %v1932, %v2060
      %v2131 = vadd.f32 %v1933, %v2062
      %v2132 = vadd.f32 %v1934, %v2065
      %v2133 = vadd.f32 %v1935, %v2067
      %v2134 = vadd.f32 %v1936, %v2070
      %v2135 = vadd.f32 %v1937, %v2072
      %v2136 = vadd.f32 %v1938, %v2075
      %v2137 = vadd.f32 %v1939, %v2077
      %v2138 = vadd.f32 %v1940, %v2080
      %v2139 = vadd.f32 %v1941, %v2082
      %v2140 = vadd.f32 %v1942, %v2085
      %v2141 = vadd.f32 %v1943, %v2087
      %v2142 = vadd.f32 %v1944, %v2090
      %v2143 = vadd.f32 %v1945, %v2092
      %v2144 = vadd.f32 %v1946, %v2095
      %v2145 = vadd.f32 %v1947, %v2097
      %v2146 = vadd.f32 %v1948, %v2100
      %v2147 = vadd.f32 %v1949, %v2102
      %v2148 = vadd.f32 %v1950, %v2105
      %v2149 = vadd.f32 %v1951, %v2107
      %v2150 = vadd.f32 %v1952, %v2110
      %v2151 = vadd.f32 %v1953, %v2112
      %v2152 = vadd.f32 %v1954, %v2115
      %v2153 = vadd.f32 %v1955, %v2117
      %v2154 = vadd.f32 %v1956, %v2120
      %v2155 = vadd.f32 %v1957, %v2122
      %s2156 = scalar_lea.vmem %s248, 384
      %v2157 = vld [vmem:[%s2156] sm:$0xf]
      %v2158 = vld [vmem:[%s2156 + $0x4] sm:$0xf]
      %v2159 = vld [vmem:[%s2156 + $0x8] sm:$0xf]
      %v2160 = vld [vmem:[%s2156 + $0xc] sm:$0xf]
      %v2161 = vld [vmem:[%s2156 + $0x10] sm:$0xf]
      %v2162 = vld [vmem:[%s2156 + $0x14] sm:$0xf]
      %v2163 = vld [vmem:[%s2156 + $0x18] sm:$0xf]
      %v2164 = vld [vmem:[%s2156 + $0x1c] sm:$0xf]
      %v2165 = vld [vmem:[%s2156 + $0x20] sm:$0xf]
      %v2166 = vld [vmem:[%s2156 + $0x24] sm:$0xf]
      %v2167 = vld [vmem:[%s2156 + $0x28] sm:$0xf]
      %v2168 = vld [vmem:[%s2156 + $0x2c] sm:$0xf]
      %v2169 = vld [vmem:[%s2156 + $0x30] sm:$0xf]
      %v2170 = vld [vmem:[%s2156 + $0x34] sm:$0xf]
      %v2171 = vld [vmem:[%s2156 + $0x38] sm:$0xf]
      %v2172 = vld [vmem:[%s2156 + $0x3c] sm:$0xf]
      %v2175 = vunpack.c.l.b16 %v314
      %v2176 = vunpack.c.l.b16 %v315
      %v2177 = vpack.c.b16 %v2176, %v2175
      %v2195 = vunpack.c.l.b16 %v2157
      %v2196 = vunpack.c.l.b16 %v2158
      %v2197 = vunpack.c.l.b16 %v2159
      %v2198 = vunpack.c.l.b16 %v2160
      %v2199 = vunpack.c.l.b16 %v2161
      %v2200 = vunpack.c.l.b16 %v2162
      %v2201 = vunpack.c.l.b16 %v2163
      %v2202 = vunpack.c.l.b16 %v2164
      %v2203 = vunpack.c.l.b16 %v2165
      %v2204 = vunpack.c.l.b16 %v2166
      %v2205 = vunpack.c.l.b16 %v2167
      %v2206 = vunpack.c.l.b16 %v2168
      %v2207 = vunpack.c.l.b16 %v2169
      %v2208 = vunpack.c.l.b16 %v2170
      %v2209 = vunpack.c.l.b16 %v2171
      %v2210 = vunpack.c.l.b16 %v2172
      %v2211 = vpack.c.b16 %v2196, %v2195
      %v2212 = vpack.c.b16 %v2198, %v2197
      %v2213 = vpack.c.b16 %v2200, %v2199
      %v2214 = vpack.c.b16 %v2202, %v2201
      %v2215 = vpack.c.b16 %v2204, %v2203
      %v2216 = vpack.c.b16 %v2206, %v2205
      %v2217 = vpack.c.b16 %v2208, %v2207
      %v2218 = vpack.c.b16 %v2210, %v2209
      %2227 = vmatpush.bf16.msra.mxu0 %v2218
      %2228 = vmatpush.bf16.msra.mxu0 %v2217
      %2229 = vmatpush.bf16.msra.mxu0 %v2216
      %2230 = vmatpush.bf16.msra.mxu0 %v2215
      %2231 = vmatpush.bf16.msra.mxu0 %v2214
      %2232 = vmatpush.bf16.msra.mxu0 %v2213
      %2233 = vmatpush.bf16.msra.mxu0 %v2212
      %2234 = vmatpush.bf16.msra.mxu0 %v2211
      %2235 = vmatmul.bf16.gmra.mxu0 %v1004
      %v2236 = vpop.f32.mrf.mxu0
      %v2237 = vadd.f32 0.0, %v2236
      %v2238 = vpop.f32.mrf.mxu0
      %v2239 = vadd.f32 0.0, %v2238
      %2240 = vmatmul.bf16.gmra.mxu0 %v1005
      %v2241 = vpop.f32.mrf.mxu0
      %v2242 = vadd.f32 0.0, %v2241
      %v2243 = vpop.f32.mrf.mxu0
      %v2244 = vadd.f32 0.0, %v2243
      %2245 = vmatmul.bf16.gmra.mxu0 %v1006
      %v2246 = vpop.f32.mrf.mxu0
      %v2247 = vadd.f32 0.0, %v2246
      %v2248 = vpop.f32.mrf.mxu0
      %v2249 = vadd.f32 0.0, %v2248
      %2250 = vmatmul.bf16.gmra.mxu0 %v1007
      %v2251 = vpop.f32.mrf.mxu0
      %v2252 = vadd.f32 0.0, %v2251
      %v2253 = vpop.f32.mrf.mxu0
      %v2254 = vadd.f32 0.0, %v2253
      %2255 = vmatmul.bf16.gmra.mxu0 %v1008
      %v2256 = vpop.f32.mrf.mxu0
      %v2257 = vadd.f32 0.0, %v2256
      %v2258 = vpop.f32.mrf.mxu0
      %v2259 = vadd.f32 0.0, %v2258
      %2260 = vmatmul.bf16.gmra.mxu0 %v1009
      %v2261 = vpop.f32.mrf.mxu0
      %v2262 = vadd.f32 0.0, %v2261
      %v2263 = vpop.f32.mrf.mxu0
      %v2264 = vadd.f32 0.0, %v2263
      %2265 = vmatmul.bf16.gmra.mxu0 %v1010
      %v2266 = vpop.f32.mrf.mxu0
      %v2267 = vadd.f32 0.0, %v2266
      %v2268 = vpop.f32.mrf.mxu0
      %v2269 = vadd.f32 0.0, %v2268
      %2270 = vmatmul.bf16.gmra.mxu0 %v1011
      %v2271 = vpop.f32.mrf.mxu0
      %v2272 = vadd.f32 0.0, %v2271
      %v2273 = vpop.f32.mrf.mxu0
      %v2274 = vadd.f32 0.0, %v2273
      %2275 = vmatmul.bf16.gmra.mxu0 %v1012
      %v2276 = vpop.f32.mrf.mxu0
      %v2277 = vadd.f32 0.0, %v2276
      %v2278 = vpop.f32.mrf.mxu0
      %v2279 = vadd.f32 0.0, %v2278
      %2280 = vmatmul.bf16.gmra.mxu0 %v1013
      %v2281 = vpop.f32.mrf.mxu0
      %v2282 = vadd.f32 0.0, %v2281
      %v2283 = vpop.f32.mrf.mxu0
      %v2284 = vadd.f32 0.0, %v2283
      %2285 = vmatmul.bf16.gmra.mxu0 %v1014
      %v2286 = vpop.f32.mrf.mxu0
      %v2287 = vadd.f32 0.0, %v2286
      %v2288 = vpop.f32.mrf.mxu0
      %v2289 = vadd.f32 0.0, %v2288
      %2290 = vmatmul.bf16.gmra.mxu0 %v1015
      %v2291 = vpop.f32.mrf.mxu0
      %v2292 = vadd.f32 0.0, %v2291
      %v2293 = vpop.f32.mrf.mxu0
      %v2294 = vadd.f32 0.0, %v2293
      %2295 = vmatmul.bf16.gmra.mxu0 %v1016
      %v2296 = vpop.f32.mrf.mxu0
      %v2297 = vadd.f32 0.0, %v2296
      %v2298 = vpop.f32.mrf.mxu0
      %v2299 = vadd.f32 0.0, %v2298
      %2300 = vmatmul.bf16.gmra.mxu0 %v1017
      %v2301 = vpop.f32.mrf.mxu0
      %v2302 = vadd.f32 0.0, %v2301
      %v2303 = vpop.f32.mrf.mxu0
      %v2304 = vadd.f32 0.0, %v2303
      %2305 = vmatmul.bf16.gmra.mxu0 %v1573
      %v2306 = vpop.f32.mrf.mxu0
      %v2307 = vadd.f32 0.0, %v2306
      %v2308 = vpop.f32.mrf.mxu0
      %v2309 = vadd.f32 0.0, %v2308
      %2310 = vmatmul.bf16.gmra.mxu0 %v2177
      %v2311 = vpop.f32.mrf.mxu0
      %v2312 = vadd.f32 0.0, %v2311
      %v2313 = vpop.f32.mrf.mxu0
      %v2314 = vadd.f32 0.0, %v2313
      %2315 = vdwg.mxu0
      %v2316 = vadd.f32 %v2124, %v2237
      %v2317 = vadd.f32 %v2125, %v2239
      %v2318 = vadd.f32 %v2126, %v2242
      %v2319 = vadd.f32 %v2127, %v2244
      %v2320 = vadd.f32 %v2128, %v2247
      %v2321 = vadd.f32 %v2129, %v2249
      %v2322 = vadd.f32 %v2130, %v2252
      %v2323 = vadd.f32 %v2131, %v2254
      %v2324 = vadd.f32 %v2132, %v2257
      %v2325 = vadd.f32 %v2133, %v2259
      %v2326 = vadd.f32 %v2134, %v2262
      %v2327 = vadd.f32 %v2135, %v2264
      %v2328 = vadd.f32 %v2136, %v2267
      %v2329 = vadd.f32 %v2137, %v2269
      %v2330 = vadd.f32 %v2138, %v2272
      %v2331 = vadd.f32 %v2139, %v2274
      %v2332 = vadd.f32 %v2140, %v2277
      %v2333 = vadd.f32 %v2141, %v2279
      %v2334 = vadd.f32 %v2142, %v2282
      %v2335 = vadd.f32 %v2143, %v2284
      %v2336 = vadd.f32 %v2144, %v2287
      %v2337 = vadd.f32 %v2145, %v2289
      %v2338 = vadd.f32 %v2146, %v2292
      %v2339 = vadd.f32 %v2147, %v2294
      %v2340 = vadd.f32 %v2148, %v2297
      %v2341 = vadd.f32 %v2149, %v2299
      %v2342 = vadd.f32 %v2150, %v2302
      %v2343 = vadd.f32 %v2151, %v2304
      %v2344 = vadd.f32 %v2152, %v2307
      %v2345 = vadd.f32 %v2153, %v2309
      %v2346 = vadd.f32 %v2154, %v2312
      %v2347 = vadd.f32 %v2155, %v2314
      %v2349 = vshrl.u32 %v314, 16
      %v2351 = vrot.slane %v2349, 4
      %v2352 = vshll.u32 %v314, 16
      %v2354 = vrot.slane %v2352, 5
      %v2355 = vor.u32 %v2351, %v2354
      %v2356 = vrot.slane %v2355, 4
      %v2358 = vshll.u32 %v315, 16
      %v2360 = vrot.slane %v2358, 5
      %v2361 = vsel %vm335, %v2356, %v2360
      %v2362 = vshrl.u32 %v315, 16
      %v2364 = vrot.slane %v2362, 4
      %v2365 = vor.u32 %v2364, %v2360
      %v2366 = vrot.slane %v2365, 4
      %v2368 = vshll.u32 %v316, 16
      %v2370 = vrot.slane %v2368, 5
      %v2371 = vsel %vm335, %v2366, %v2370
      %s2372 = scalar_lea.vmem %s248, 448
      %v2373 = vld [vmem:[%s2372] sm:$0xf]
      %v2374 = vld [vmem:[%s2372 + $0x4] sm:$0xf]
      %v2375 = vld [vmem:[%s2372 + $0x8] sm:$0xf]
      %v2376 = vld [vmem:[%s2372 + $0xc] sm:$0xf]
      %v2377 = vld [vmem:[%s2372 + $0x10] sm:$0xf]
      %v2378 = vld [vmem:[%s2372 + $0x14] sm:$0xf]
      %v2379 = vld [vmem:[%s2372 + $0x18] sm:$0xf]
      %v2380 = vld [vmem:[%s2372 + $0x1c] sm:$0xf]
      %v2381 = vld [vmem:[%s2372 + $0x20] sm:$0xf]
      %v2382 = vld [vmem:[%s2372 + $0x24] sm:$0xf]
      %v2383 = vld [vmem:[%s2372 + $0x28] sm:$0xf]
      %v2384 = vld [vmem:[%s2372 + $0x2c] sm:$0xf]
      %v2385 = vld [vmem:[%s2372 + $0x30] sm:$0xf]
      %v2386 = vld [vmem:[%s2372 + $0x34] sm:$0xf]
      %v2387 = vld [vmem:[%s2372 + $0x38] sm:$0xf]
      %v2388 = vld [vmem:[%s2372 + $0x3c] sm:$0xf]
      %v2389 = vunpack.c.l.b16 %v2361
      %v2390 = vunpack.c.l.b16 %v2371
      %v2391 = vpack.c.b16 %v2390, %v2389
      %v2409 = vunpack.c.l.b16 %v2373
      %v2410 = vunpack.c.l.b16 %v2374
      %v2411 = vunpack.c.l.b16 %v2375
      %v2412 = vunpack.c.l.b16 %v2376
      %v2413 = vunpack.c.l.b16 %v2377
      %v2414 = vunpack.c.l.b16 %v2378
      %v2415 = vunpack.c.l.b16 %v2379
      %v2416 = vunpack.c.l.b16 %v2380
      %v2417 = vunpack.c.l.b16 %v2381
      %v2418 = vunpack.c.l.b16 %v2382
      %v2419 = vunpack.c.l.b16 %v2383
      %v2420 = vunpack.c.l.b16 %v2384
      %v2421 = vunpack.c.l.b16 %v2385
      %v2422 = vunpack.c.l.b16 %v2386
      %v2423 = vunpack.c.l.b16 %v2387
      %v2424 = vunpack.c.l.b16 %v2388
      %v2425 = vpack.c.b16 %v2410, %v2409
      %v2426 = vpack.c.b16 %v2412, %v2411
      %v2427 = vpack.c.b16 %v2414, %v2413
      %v2428 = vpack.c.b16 %v2416, %v2415
      %v2429 = vpack.c.b16 %v2418, %v2417
      %v2430 = vpack.c.b16 %v2420, %v2419
      %v2431 = vpack.c.b16 %v2422, %v2421
      %v2432 = vpack.c.b16 %v2424, %v2423
      %2441 = vmatpush.bf16.msra.mxu0 %v2432
      %2442 = vmatpush.bf16.msra.mxu0 %v2431
      %2443 = vmatpush.bf16.msra.mxu0 %v2430
      %2444 = vmatpush.bf16.msra.mxu0 %v2429
      %2445 = vmatpush.bf16.msra.mxu0 %v2428
      %2446 = vmatpush.bf16.msra.mxu0 %v2427
      %2447 = vmatpush.bf16.msra.mxu0 %v2426
      %2448 = vmatpush.bf16.msra.mxu0 %v2425
      %2449 = vmatmul.bf16.gmra.mxu0 %v771
      %v2450 = vpop.f32.mrf.mxu0
      %v2451 = vadd.f32 0.0, %v2450
      %v2452 = vpop.f32.mrf.mxu0
      %v2453 = vadd.f32 0.0, %v2452
      %2454 = vmatmul.bf16.gmra.mxu0 %v772
      %v2455 = vpop.f32.mrf.mxu0
      %v2456 = vadd.f32 0.0, %v2455
      %v2457 = vpop.f32.mrf.mxu0
      %v2458 = vadd.f32 0.0, %v2457
      %2459 = vmatmul.bf16.gmra.mxu0 %v773
      %v2460 = vpop.f32.mrf.mxu0
      %v2461 = vadd.f32 0.0, %v2460
      %v2462 = vpop.f32.mrf.mxu0
      %v2463 = vadd.f32 0.0, %v2462
      %2464 = vmatmul.bf16.gmra.mxu0 %v774
      %v2465 = vpop.f32.mrf.mxu0
      %v2466 = vadd.f32 0.0, %v2465
      %v2467 = vpop.f32.mrf.mxu0
      %v2468 = vadd.f32 0.0, %v2467
      %2469 = vmatmul.bf16.gmra.mxu0 %v775
      %v2470 = vpop.f32.mrf.mxu0
      %v2471 = vadd.f32 0.0, %v2470
      %v2472 = vpop.f32.mrf.mxu0
      %v2473 = vadd.f32 0.0, %v2472
      %2474 = vmatmul.bf16.gmra.mxu0 %v776
      %v2475 = vpop.f32.mrf.mxu0
      %v2476 = vadd.f32 0.0, %v2475
      %v2477 = vpop.f32.mrf.mxu0
      %v2478 = vadd.f32 0.0, %v2477
      %2479 = vmatmul.bf16.gmra.mxu0 %v777
      %v2480 = vpop.f32.mrf.mxu0
      %v2481 = vadd.f32 0.0, %v2480
      %v2482 = vpop.f32.mrf.mxu0
      %v2483 = vadd.f32 0.0, %v2482
      %2484 = vmatmul.bf16.gmra.mxu0 %v778
      %v2485 = vpop.f32.mrf.mxu0
      %v2486 = vadd.f32 0.0, %v2485
      %v2487 = vpop.f32.mrf.mxu0
      %v2488 = vadd.f32 0.0, %v2487
      %2489 = vmatmul.bf16.gmra.mxu0 %v779
      %v2490 = vpop.f32.mrf.mxu0
      %v2491 = vadd.f32 0.0, %v2490
      %v2492 = vpop.f32.mrf.mxu0
      %v2493 = vadd.f32 0.0, %v2492
      %2494 = vmatmul.bf16.gmra.mxu0 %v780
      %v2495 = vpop.f32.mrf.mxu0
      %v2496 = vadd.f32 0.0, %v2495
      %v2497 = vpop.f32.mrf.mxu0
      %v2498 = vadd.f32 0.0, %v2497
      %2499 = vmatmul.bf16.gmra.mxu0 %v781
      %v2500 = vpop.f32.mrf.mxu0
      %v2501 = vadd.f32 0.0, %v2500
      %v2502 = vpop.f32.mrf.mxu0
      %v2503 = vadd.f32 0.0, %v2502
      %2504 = vmatmul.bf16.gmra.mxu0 %v782
      %v2505 = vpop.f32.mrf.mxu0
      %v2506 = vadd.f32 0.0, %v2505
      %v2507 = vpop.f32.mrf.mxu0
      %v2508 = vadd.f32 0.0, %v2507
      %2509 = vmatmul.bf16.gmra.mxu0 %v783
      %v2510 = vpop.f32.mrf.mxu0
      %v2511 = vadd.f32 0.0, %v2510
      %v2512 = vpop.f32.mrf.mxu0
      %v2513 = vadd.f32 0.0, %v2512
      %2514 = vmatmul.bf16.gmra.mxu0 %v784
      %v2515 = vpop.f32.mrf.mxu0
      %v2516 = vadd.f32 0.0, %v2515
      %v2517 = vpop.f32.mrf.mxu0
      %v2518 = vadd.f32 0.0, %v2517
      %2519 = vmatmul.bf16.gmra.mxu0 %v1787
      %v2520 = vpop.f32.mrf.mxu0
      %v2521 = vadd.f32 0.0, %v2520
      %v2522 = vpop.f32.mrf.mxu0
      %v2523 = vadd.f32 0.0, %v2522
      %2524 = vmatmul.bf16.gmra.mxu0 %v2391
      %v2525 = vpop.f32.mrf.mxu0
      %v2526 = vadd.f32 0.0, %v2525
      %v2527 = vpop.f32.mrf.mxu0
      %v2528 = vadd.f32 0.0, %v2527
      %2529 = vdwg.mxu0
      %v2530 = vadd.f32 %v2316, %v2451
      %v2531 = vadd.f32 %v2317, %v2453
      %v2532 = vadd.f32 %v2318, %v2456
      %v2533 = vadd.f32 %v2319, %v2458
      %v2534 = vadd.f32 %v2320, %v2461
      %v2535 = vadd.f32 %v2321, %v2463
      %v2536 = vadd.f32 %v2322, %v2466
      %v2537 = vadd.f32 %v2323, %v2468
      %v2538 = vadd.f32 %v2324, %v2471
      %v2539 = vadd.f32 %v2325, %v2473
      %v2540 = vadd.f32 %v2326, %v2476
      %v2541 = vadd.f32 %v2327, %v2478
      %v2542 = vadd.f32 %v2328, %v2481
      %v2543 = vadd.f32 %v2329, %v2483
      %v2544 = vadd.f32 %v2330, %v2486
      %v2545 = vadd.f32 %v2331, %v2488
      %v2546 = vadd.f32 %v2332, %v2491
      %v2547 = vadd.f32 %v2333, %v2493
      %v2548 = vadd.f32 %v2334, %v2496
      %v2549 = vadd.f32 %v2335, %v2498
      %v2550 = vadd.f32 %v2336, %v2501
      %v2551 = vadd.f32 %v2337, %v2503
      %v2552 = vadd.f32 %v2338, %v2506
      %v2553 = vadd.f32 %v2339, %v2508
      %v2554 = vadd.f32 %v2340, %v2511
      %v2555 = vadd.f32 %v2341, %v2513
      %v2556 = vadd.f32 %v2342, %v2516
      %v2557 = vadd.f32 %v2343, %v2518
      %v2558 = vadd.f32 %v2344, %v2521
      %v2559 = vadd.f32 %v2345, %v2523
      %v2560 = vadd.f32 %v2346, %v2526
      %v2561 = vadd.f32 %v2347, %v2528
      %v2563 = vrot.slane %v314, 5
      %v2564 = vrot.slane %v2563, 4
      %v2565 = vrot.slane %v315, 5
      %v2566 = vsel %vm1189, %v2564, %v2565
      %v2567 = vrot.slane %v2565, 4
      %v2568 = vrot.slane %v316, 5
      %v2569 = vsel %vm1189, %v2567, %v2568
      %s2570 = scalar_lea.vmem %s248, 512
      %v2571 = vld [vmem:[%s2570] sm:$0xf]
      %v2572 = vld [vmem:[%s2570 + $0x4] sm:$0xf]
      %v2573 = vld [vmem:[%s2570 + $0x8] sm:$0xf]
      %v2574 = vld [vmem:[%s2570 + $0xc] sm:$0xf]
      %v2575 = vld [vmem:[%s2570 + $0x10] sm:$0xf]
      %v2576 = vld [vmem:[%s2570 + $0x14] sm:$0xf]
      %v2577 = vld [vmem:[%s2570 + $0x18] sm:$0xf]
      %v2578 = vld [vmem:[%s2570 + $0x1c] sm:$0xf]
      %v2579 = vld [vmem:[%s2570 + $0x20] sm:$0xf]
      %v2580 = vld [vmem:[%s2570 + $0x24] sm:$0xf]
      %v2581 = vld [vmem:[%s2570 + $0x28] sm:$0xf]
      %v2582 = vld [vmem:[%s2570 + $0x2c] sm:$0xf]
      %v2583 = vld [vmem:[%s2570 + $0x30] sm:$0xf]
      %v2584 = vld [vmem:[%s2570 + $0x34] sm:$0xf]
      %v2585 = vld [vmem:[%s2570 + $0x38] sm:$0xf]
      %v2586 = vld [vmem:[%s2570 + $0x3c] sm:$0xf]
      %v2587 = vunpack.c.l.b16 %v2566
      %v2588 = vunpack.c.l.b16 %v2569
      %v2589 = vpack.c.b16 %v2588, %v2587
      %v2607 = vunpack.c.l.b16 %v2571
      %v2608 = vunpack.c.l.b16 %v2572
      %v2609 = vunpack.c.l.b16 %v2573
      %v2610 = vunpack.c.l.b16 %v2574
      %v2611 = vunpack.c.l.b16 %v2575
      %v2612 = vunpack.c.l.b16 %v2576
      %v2613 = vunpack.c.l.b16 %v2577
      %v2614 = vunpack.c.l.b16 %v2578
      %v2615 = vunpack.c.l.b16 %v2579
      %v2616 = vunpack.c.l.b16 %v2580
      %v2617 = vunpack.c.l.b16 %v2581
      %v2618 = vunpack.c.l.b16 %v2582
      %v2619 = vunpack.c.l.b16 %v2583
      %v2620 = vunpack.c.l.b16 %v2584
      %v2621 = vunpack.c.l.b16 %v2585
      %v2622 = vunpack.c.l.b16 %v2586
      %v2623 = vpack.c.b16 %v2608, %v2607
      %v2624 = vpack.c.b16 %v2610, %v2609
      %v2625 = vpack.c.b16 %v2612, %v2611
      %v2626 = vpack.c.b16 %v2614, %v2613
      %v2627 = vpack.c.b16 %v2616, %v2615
      %v2628 = vpack.c.b16 %v2618, %v2617
      %v2629 = vpack.c.b16 %v2620, %v2619
      %v2630 = vpack.c.b16 %v2622, %v2621
      %2639 = vmatpush.bf16.msra.mxu0 %v2630
      %2640 = vmatpush.bf16.msra.mxu0 %v2629
      %2641 = vmatpush.bf16.msra.mxu0 %v2628
      %2642 = vmatpush.bf16.msra.mxu0 %v2627
      %2643 = vmatpush.bf16.msra.mxu0 %v2626
      %2644 = vmatpush.bf16.msra.mxu0 %v2625
      %2645 = vmatpush.bf16.msra.mxu0 %v2624
      %2646 = vmatpush.bf16.msra.mxu0 %v2623
      %2647 = vmatmul.bf16.gmra.mxu0 %v1353
      %v2648 = vpop.f32.mrf.mxu0
      %v2649 = vadd.f32 0.0, %v2648
      %v2650 = vpop.f32.mrf.mxu0
      %v2651 = vadd.f32 0.0, %v2650
      %2652 = vmatmul.bf16.gmra.mxu0 %v1354
      %v2653 = vpop.f32.mrf.mxu0
      %v2654 = vadd.f32 0.0, %v2653
      %v2655 = vpop.f32.mrf.mxu0
      %v2656 = vadd.f32 0.0, %v2655
      %2657 = vmatmul.bf16.gmra.mxu0 %v1355
      %v2658 = vpop.f32.mrf.mxu0
      %v2659 = vadd.f32 0.0, %v2658
      %v2660 = vpop.f32.mrf.mxu0
      %v2661 = vadd.f32 0.0, %v2660
      %2662 = vmatmul.bf16.gmra.mxu0 %v1356
      %v2663 = vpop.f32.mrf.mxu0
      %v2664 = vadd.f32 0.0, %v2663
      %v2665 = vpop.f32.mrf.mxu0
      %v2666 = vadd.f32 0.0, %v2665
      %2667 = vmatmul.bf16.gmra.mxu0 %v1357
      %v2668 = vpop.f32.mrf.mxu0
      %v2669 = vadd.f32 0.0, %v2668
      %v2670 = vpop.f32.mrf.mxu0
      %v2671 = vadd.f32 0.0, %v2670
      %2672 = vmatmul.bf16.gmra.mxu0 %v1358
      %v2673 = vpop.f32.mrf.mxu0
      %v2674 = vadd.f32 0.0, %v2673
      %v2675 = vpop.f32.mrf.mxu0
      %v2676 = vadd.f32 0.0, %v2675
      %2677 = vmatmul.bf16.gmra.mxu0 %v1359
      %v2678 = vpop.f32.mrf.mxu0
      %v2679 = vadd.f32 0.0, %v2678
      %v2680 = vpop.f32.mrf.mxu0
      %v2681 = vadd.f32 0.0, %v2680
      %2682 = vmatmul.bf16.gmra.mxu0 %v1360
      %v2683 = vpop.f32.mrf.mxu0
      %v2684 = vadd.f32 0.0, %v2683
      %v2685 = vpop.f32.mrf.mxu0
      %v2686 = vadd.f32 0.0, %v2685
      %2687 = vmatmul.bf16.gmra.mxu0 %v1361
      %v2688 = vpop.f32.mrf.mxu0
      %v2689 = vadd.f32 0.0, %v2688
      %v2690 = vpop.f32.mrf.mxu0
      %v2691 = vadd.f32 0.0, %v2690
      %2692 = vmatmul.bf16.gmra.mxu0 %v1362
      %v2693 = vpop.f32.mrf.mxu0
      %v2694 = vadd.f32 0.0, %v2693
      %v2695 = vpop.f32.mrf.mxu0
      %v2696 = vadd.f32 0.0, %v2695
      %2697 = vmatmul.bf16.gmra.mxu0 %v1363
      %v2698 = vpop.f32.mrf.mxu0
      %v2699 = vadd.f32 0.0, %v2698
      %v2700 = vpop.f32.mrf.mxu0
      %v2701 = vadd.f32 0.0, %v2700
      %2702 = vmatmul.bf16.gmra.mxu0 %v1364
      %v2703 = vpop.f32.mrf.mxu0
      %v2704 = vadd.f32 0.0, %v2703
      %v2705 = vpop.f32.mrf.mxu0
      %v2706 = vadd.f32 0.0, %v2705
      %2707 = vmatmul.bf16.gmra.mxu0 %v1365
      %v2708 = vpop.f32.mrf.mxu0
      %v2709 = vadd.f32 0.0, %v2708
      %v2710 = vpop.f32.mrf.mxu0
      %v2711 = vadd.f32 0.0, %v2710
      %2712 = vmatmul.bf16.gmra.mxu0 %v1366
      %v2713 = vpop.f32.mrf.mxu0
      %v2714 = vadd.f32 0.0, %v2713
      %v2715 = vpop.f32.mrf.mxu0
      %v2716 = vadd.f32 0.0, %v2715
      %2717 = vmatmul.bf16.gmra.mxu0 %v1985
      %v2718 = vpop.f32.mrf.mxu0
      %v2719 = vadd.f32 0.0, %v2718
      %v2720 = vpop.f32.mrf.mxu0
      %v2721 = vadd.f32 0.0, %v2720
      %2722 = vmatmul.bf16.gmra.mxu0 %v2589
      %v2723 = vpop.f32.mrf.mxu0
      %v2724 = vadd.f32 0.0, %v2723
      %v2725 = vpop.f32.mrf.mxu0
      %v2726 = vadd.f32 0.0, %v2725
      %2727 = vdwg.mxu0
      %v2728 = vadd.f32 %v2530, %v2649
      %v2729 = vadd.f32 %v2531, %v2651
      %v2730 = vadd.f32 %v2532, %v2654
      %v2731 = vadd.f32 %v2533, %v2656
      %v2732 = vadd.f32 %v2534, %v2659
      %v2733 = vadd.f32 %v2535, %v2661
      %v2734 = vadd.f32 %v2536, %v2664
      %v2735 = vadd.f32 %v2537, %v2666
      %v2736 = vadd.f32 %v2538, %v2669
      %v2737 = vadd.f32 %v2539, %v2671
      %v2738 = vadd.f32 %v2540, %v2674
      %v2739 = vadd.f32 %v2541, %v2676
      %v2740 = vadd.f32 %v2542, %v2679
      %v2741 = vadd.f32 %v2543, %v2681
      %v2742 = vadd.f32 %v2544, %v2684
      %v2743 = vadd.f32 %v2545, %v2686
      %v2744 = vadd.f32 %v2546, %v2689
      %v2745 = vadd.f32 %v2547, %v2691
      %v2746 = vadd.f32 %v2548, %v2694
      %v2747 = vadd.f32 %v2549, %v2696
      %v2748 = vadd.f32 %v2550, %v2699
      %v2749 = vadd.f32 %v2551, %v2701
      %v2750 = vadd.f32 %v2552, %v2704
      %v2751 = vadd.f32 %v2553, %v2706
      %v2752 = vadd.f32 %v2554, %v2709
      %v2753 = vadd.f32 %v2555, %v2711
      %v2754 = vadd.f32 %v2556, %v2714
      %v2755 = vadd.f32 %v2557, %v2716
      %v2756 = vadd.f32 %v2558, %v2719
      %v2757 = vadd.f32 %v2559, %v2721
      %v2758 = vadd.f32 %v2560, %v2724
      %v2759 = vadd.f32 %v2561, %v2726
      %v2760 = vld [vmem:[%s251] sm:$0x1]
      %v2762 = vperm.slane %v2760, 0
      %v2764 = vmul.f32 %v2728, %v2762
      %v2765 = vmul.f32 %v2729, %v2762
      %v2766 = vmul.f32 %v2730, %v2762
      %v2767 = vmul.f32 %v2731, %v2762
      %v2768 = vmul.f32 %v2732, %v2762
      %v2769 = vmul.f32 %v2733, %v2762
      %v2770 = vmul.f32 %v2734, %v2762
      %v2771 = vmul.f32 %v2735, %v2762
      %v2772 = vmul.f32 %v2736, %v2762
      %v2773 = vmul.f32 %v2737, %v2762
      %v2774 = vmul.f32 %v2738, %v2762
      %v2775 = vmul.f32 %v2739, %v2762
      %v2776 = vmul.f32 %v2740, %v2762
      %v2777 = vmul.f32 %v2741, %v2762
      %v2778 = vmul.f32 %v2742, %v2762
      %v2779 = vmul.f32 %v2743, %v2762
      %v2780 = vmul.f32 %v2744, %v2762
      %v2781 = vmul.f32 %v2745, %v2762
      %v2782 = vmul.f32 %v2746, %v2762
      %v2783 = vmul.f32 %v2747, %v2762
      %v2784 = vmul.f32 %v2748, %v2762
      %v2785 = vmul.f32 %v2749, %v2762
      %v2786 = vmul.f32 %v2750, %v2762
      %v2787 = vmul.f32 %v2751, %v2762
      %v2788 = vmul.f32 %v2752, %v2762
      %v2789 = vmul.f32 %v2753, %v2762
      %v2790 = vmul.f32 %v2754, %v2762
      %v2791 = vmul.f32 %v2755, %v2762
      %v2792 = vmul.f32 %v2756, %v2762
      %v2793 = vmul.f32 %v2757, %v2762
      %v2794 = vmul.f32 %v2758, %v2762
      %v2795 = vmul.f32 %v2759, %v2762
      %v2796 = vld [vmem:[%s254] sm:$0x1]
      %v2798 = vperm.slane %v2796, 0
      %v2800 = vadd.f32 %v2764, %v2798
      %v2801 = vadd.f32 %v2765, %v2798
      %v2802 = vadd.f32 %v2766, %v2798
      %v2803 = vadd.f32 %v2767, %v2798
      %v2804 = vadd.f32 %v2768, %v2798
      %v2805 = vadd.f32 %v2769, %v2798
      %v2806 = vadd.f32 %v2770, %v2798
      %v2807 = vadd.f32 %v2771, %v2798
      %v2808 = vadd.f32 %v2772, %v2798
      %v2809 = vadd.f32 %v2773, %v2798
      %v2810 = vadd.f32 %v2774, %v2798
      %v2811 = vadd.f32 %v2775, %v2798
      %v2812 = vadd.f32 %v2776, %v2798
      %v2813 = vadd.f32 %v2777, %v2798
      %v2814 = vadd.f32 %v2778, %v2798
      %v2815 = vadd.f32 %v2779, %v2798
      %v2816 = vadd.f32 %v2780, %v2798
      %v2817 = vadd.f32 %v2781, %v2798
      %v2818 = vadd.f32 %v2782, %v2798
      %v2819 = vadd.f32 %v2783, %v2798
      %v2820 = vadd.f32 %v2784, %v2798
      %v2821 = vadd.f32 %v2785, %v2798
      %v2822 = vadd.f32 %v2786, %v2798
      %v2823 = vadd.f32 %v2787, %v2798
      %v2824 = vadd.f32 %v2788, %v2798
      %v2825 = vadd.f32 %v2789, %v2798
      %v2826 = vadd.f32 %v2790, %v2798
      %v2827 = vadd.f32 %v2791, %v2798
      %v2828 = vadd.f32 %v2792, %v2798
      %v2829 = vadd.f32 %v2793, %v2798
      %v2830 = vadd.f32 %v2794, %v2798
      %v2831 = vadd.f32 %v2795, %v2798
      %v2832 = vmax.f32 %v2800, 0.0
      %v2833 = vmax.f32 %v2801, 0.0
      %v2834 = vmax.f32 %v2802, 0.0
      %v2835 = vmax.f32 %v2803, 0.0
      %v2836 = vmax.f32 %v2804, 0.0
      %v2837 = vmax.f32 %v2805, 0.0
      %v2838 = vmax.f32 %v2806, 0.0
      %v2839 = vmax.f32 %v2807, 0.0
      %v2840 = vmax.f32 %v2808, 0.0
      %v2841 = vmax.f32 %v2809, 0.0
      %v2842 = vmax.f32 %v2810, 0.0
      %v2843 = vmax.f32 %v2811, 0.0
      %v2844 = vmax.f32 %v2812, 0.0
      %v2845 = vmax.f32 %v2813, 0.0
      %v2846 = vmax.f32 %v2814, 0.0
      %v2847 = vmax.f32 %v2815, 0.0
      %v2848 = vmax.f32 %v2816, 0.0
      %v2849 = vmax.f32 %v2817, 0.0
      %v2850 = vmax.f32 %v2818, 0.0
      %v2851 = vmax.f32 %v2819, 0.0
      %v2852 = vmax.f32 %v2820, 0.0
      %v2853 = vmax.f32 %v2821, 0.0
      %v2854 = vmax.f32 %v2822, 0.0
      %v2855 = vmax.f32 %v2823, 0.0
      %v2856 = vmax.f32 %v2824, 0.0
      %v2857 = vmax.f32 %v2825, 0.0
      %v2858 = vmax.f32 %v2826, 0.0
      %v2859 = vmax.f32 %v2827, 0.0
      %v2860 = vmax.f32 %v2828, 0.0
      %v2861 = vmax.f32 %v2829, 0.0
      %v2862 = vmax.f32 %v2830, 0.0
      %v2863 = vmax.f32 %v2831, 0.0
      %v2864 = vpack.c.bf16 %v2832, %v2832
      %v2865 = vpack.c.bf16 %v2833, %v2833
      %v2866 = vpack.c.bf16 %v2834, %v2834
      %v2867 = vpack.c.bf16 %v2835, %v2835
      %v2868 = vpack.c.bf16 %v2836, %v2836
      %v2869 = vpack.c.bf16 %v2837, %v2837
      %v2870 = vpack.c.bf16 %v2838, %v2838
      %v2871 = vpack.c.bf16 %v2839, %v2839
      %v2872 = vpack.c.bf16 %v2840, %v2840
      %v2873 = vpack.c.bf16 %v2841, %v2841
      %v2874 = vpack.c.bf16 %v2842, %v2842
      %v2875 = vpack.c.bf16 %v2843, %v2843
      %v2876 = vpack.c.bf16 %v2844, %v2844
      %v2877 = vpack.c.bf16 %v2845, %v2845
      %v2878 = vpack.c.bf16 %v2846, %v2846
      %v2879 = vpack.c.bf16 %v2847, %v2847
      %v2880 = vpack.c.bf16 %v2848, %v2848
      %v2881 = vpack.c.bf16 %v2849, %v2849
      %v2882 = vpack.c.bf16 %v2850, %v2850
      %v2883 = vpack.c.bf16 %v2851, %v2851
      %v2884 = vpack.c.bf16 %v2852, %v2852
      %v2885 = vpack.c.bf16 %v2853, %v2853
      %v2886 = vpack.c.bf16 %v2854, %v2854
      %v2887 = vpack.c.bf16 %v2855, %v2855
      %v2888 = vpack.c.bf16 %v2856, %v2856
      %v2889 = vpack.c.bf16 %v2857, %v2857
      %v2890 = vpack.c.bf16 %v2858, %v2858
      %v2891 = vpack.c.bf16 %v2859, %v2859
      %v2892 = vpack.c.bf16 %v2860, %v2860
      %v2893 = vpack.c.bf16 %v2861, %v2861
      %v2894 = vpack.c.bf16 %v2862, %v2862
      %v2895 = vpack.c.bf16 %v2863, %v2863
      %2896 = vst [vmem:[%s262] sm:$0xf] %v2864
      %2897 = vst [vmem:[%s262 + $0x4] sm:$0xf] %v2865
      %2898 = vst [vmem:[%s262 + $0x8] sm:$0xf] %v2866
      %2899 = vst [vmem:[%s262 + $0xc] sm:$0xf] %v2867
      %2900 = vst [vmem:[%s262 + $0x10] sm:$0xf] %v2868
      %2901 = vst [vmem:[%s262 + $0x14] sm:$0xf] %v2869
      %2902 = vst [vmem:[%s262 + $0x18] sm:$0xf] %v2870
      %2903 = vst [vmem:[%s262 + $0x1c] sm:$0xf] %v2871
      %2904 = vst [vmem:[%s262 + $0x20] sm:$0xf] %v2872
      %2905 = vst [vmem:[%s262 + $0x24] sm:$0xf] %v2873
      %2906 = vst [vmem:[%s262 + $0x28] sm:$0xf] %v2874
      %2907 = vst [vmem:[%s262 + $0x2c] sm:$0xf] %v2875
      %2908 = vst [vmem:[%s262 + $0x30] sm:$0xf] %v2876
      %2909 = vst [vmem:[%s262 + $0x34] sm:$0xf] %v2877
      %2910 = vst [vmem:[%s262 + $0x38] sm:$0xf] %v2878
      %2911 = vst [vmem:[%s262 + $0x3c] sm:$0xf] %v2879
      %2912 = vst [vmem:[%s262 + $0x40] sm:$0xf] %v2880
      %2913 = vst [vmem:[%s262 + $0x44] sm:$0xf] %v2881
      %2914 = vst [vmem:[%s262 + $0x48] sm:$0xf] %v2882
      %2915 = vst [vmem:[%s262 + $0x4c] sm:$0xf] %v2883
      %2916 = vst [vmem:[%s262 + $0x50] sm:$0xf] %v2884
      %2917 = vst [vmem:[%s262 + $0x54] sm:$0xf] %v2885
      %2918 = vst [vmem:[%s262 + $0x58] sm:$0xf] %v2886
      %2919 = vst [vmem:[%s262 + $0x5c] sm:$0xf] %v2887
      %2920 = vst [vmem:[%s262 + $0x60] sm:$0xf] %v2888
      %2921 = vst [vmem:[%s262 + $0x64] sm:$0xf] %v2889
      %2922 = vst [vmem:[%s262 + $0x68] sm:$0xf] %v2890
      %2923 = vst [vmem:[%s262 + $0x6c] sm:$0xf] %v2891
      %2924 = vst [vmem:[%s262 + $0x70] sm:$0xf] %v2892
      %2925 = vst [vmem:[%s262 + $0x74] sm:$0xf] %v2893
      %2926 = vst [vmem:[%s262 + $0x78] sm:$0xf] %v2894
      %2927 = vst [vmem:[%s262 + $0x7c] sm:$0xf] %v2895
      %p2928 = scmp.lt.s32.totalorder %s19, 1
      %s2929 = scalar_select %p2928, %s19, 1
      %p2930 = scmp.lt.s32.totalorder %s20, 0
      %s2931 = scalar_select %p2930, %s20, 0
      %s2932 = smul.addr %s2929, 32
      %s2933 = sadd.s32 %s2931, %s2932
      %s2934 = smul.addr %s2933, 4
      %s2935 = scalar_lea.vmem %s4, %s2934
      // Predicated region
      $region37: #{res_path_forward.8} parent=35 // pred_check
        %p2936 = pneg %p151
      $region38: #{res_path_forward.8} parent=35 // pred_check_branch
        %2938 = sbr.rel (%p2936) target = $region40
      $region39: #{res_path_forward.8} parent=35 // pred_region
        _
      $region40: #{res_path_forward.8} parent=35 // pred_fallthru
        _
    $region36: #{res_path_forward.8} parent=5 // pred_fallthru
      _
    %p2939 = scmp.le.s32.totalorder 2, %s10
    // Predicated region
    $region41: #{res_path_forward.8} parent=5 // pred_check
      %p2940 = pneg %p2939
    $region42: #{res_path_forward.8} parent=5 // pred_check_branch
      %2942 = sbr.rel (%p2940) target = $region44
    $region43: #{res_path_forward.8} parent=5 // pred_region
      %s2943 = ssub.s32 %s10, 2
      // Predicated region
      $region45: #{res_path_forward.8} parent=43 // pred_check
        %p2944 = pneg %p157
      $region46: #{res_path_forward.8} parent=43 // pred_check_branch
        %2946 = sbr.rel (%p2944) target = $region48
      $region47: #{res_path_forward.8} parent=43 // pred_region
        %p2947 = scmp.lt.s32.totalorder %s21, 1
        %s2948 = scalar_select %p2947, %s21, 1
        %p2949 = scmp.lt.s32.totalorder %s22, 0
        %s2950 = scalar_select %p2949, %s22, 0
        %s2951 = smul.addr %s2948, 32
        %s2952 = sadd.s32 %s2950, %s2951
        %s2953 = smul.addr %s2952, 4
        %s2954 = scalar_lea.vmem %s4, %s2953
      $region48: #{res_path_forward.8} parent=43 // pred_fallthru
        _
    $region44: #{res_path_forward.8} parent=5 // pred_fallthru
      _
  $region6: #{res_path_forward.8} parent=0 // loop_footer
    %s14 = sadd.s32 1, %s10
  $region7: #{res_path_forward.8} parent=0 // loop_footer_branch
    %9 = sbr.rel target = $region3
  $region8: #{res_path_forward.8} parent=0 // loop_exit
    _

</llo_original>
